<compile_context>
chip_gen: v5e
topology: v5e:2x2
jax: 0.10.0
libtpu: 0.0.40
codegen_flags: <defaults>
</compile_context>

<pallas_src>
import functools

import jax
import jax.numpy as jnp
from jax.experimental import pallas as pl
from jax.experimental.pallas import tpu as pltpu


IN_DIM = 142
H1_DIM = 142
H2_DIM = 71
H3_DIM = 71
OUT_DIM = 1


def deep_mlp_kernel(x_ref,
                    w1_ref, b1_ref,
                    w2_ref, b2_ref,
                    w3_ref, b3_ref,
                    w4_ref, b4_ref,
                    o_ref):
    # x tile: (TB, 142) f32 -> cast to bf16 in-kernel (VPU, hidden under MXU).
    x = x_ref[...].astype(jnp.bfloat16)

    # ---- layer1 + ReLU (bf16 MXU, f32 accumulate) -------------------------
    h = jnp.dot(x, w1_ref[...], preferred_element_type=jnp.float32) + b1_ref[...]
    h = jnp.maximum(h, 0.0).astype(jnp.bfloat16)

    # ---- layer2 + ReLU -----------------------------------------------------
    h = jnp.dot(h, w2_ref[...], preferred_element_type=jnp.float32) + b2_ref[...]
    h = jnp.maximum(h, 0.0).astype(jnp.bfloat16)

    # ---- layer3 + ReLU (keep f32 for the VPU output layer) -----------------
    h = jnp.dot(h, w3_ref[...], preferred_element_type=jnp.float32) + b3_ref[...]
    h = jnp.maximum(h, 0.0)

    # ---- output + Sigmoid --------------------------------------------------
    # N=1 output layer on the VPU + XLU lane reduction instead of a padded
    # 128-lane MXU tile. w4 is a (1, 71) f32 row vector, b4 is (1, 1) f32.
    logit = jnp.sum(h * w4_ref[...], axis=-1, keepdims=True) + b4_ref[...]
    # Exact sigmoid; 1/(1+inf) -> 0 for very negative logits.
    o_ref[...] = (1.0 / (1.0 + jnp.exp(-logit))).astype(o_ref.dtype)


@functools.partial(jax.jit, static_argnames=("block_rows",))
def deep_forward(x, params, *, block_rows=4096):
    """x: [B, 142] float32 -> [B, 1] float32."""
    (w1, b1), (w2, b2), (w3, b3), (w4, b4) = params
    B, F = x.shape
    assert F == IN_DIM, F

    # Batch tile: either the whole array (any B) or a multiple of 8 sublanes.
    if block_rows >= B:
        tb = B                       # single block == full array dim, always legal
    else:
        tb = max(8, (block_rows // 8) * 8)
    num_blocks = pl.cdiv(B, tb)      # partial tail block is masked by Pallas

    # Advisory cost estimate for XLA's scheduler.
    matmul_flops = 2 * B * (IN_DIM * H1_DIM + H1_DIM * H2_DIM
                            + H2_DIM * H3_DIM + H3_DIM * OUT_DIM)
    weight_bytes = (2 * (IN_DIM * H1_DIM + H1_DIM * H2_DIM + H2_DIM * H3_DIM)
                    + 4 * H3_DIM * OUT_DIM)
    bias_bytes = 4 * (H1_DIM + H2_DIM + H3_DIM + OUT_DIM)
    cost = pl.CostEstimate(
        flops=matmul_flops,
        transcendentals=B,  # one exp per row
        bytes_accessed=B * IN_DIM * 4 + B * OUT_DIM * 4
        + weight_bytes + bias_bytes,
    )

    def resident(a):
        # Same block for every grid step -> stays in VMEM, DMA'd once.
        return pl.BlockSpec(a.shape, lambda i: (0,) * a.ndim)

    out = pl.pallas_call(
        deep_mlp_kernel,
        out_shape=jax.ShapeDtypeStruct((B, OUT_DIM), jnp.float32),
        grid=(num_blocks,),
        in_specs=[
            pl.BlockSpec((tb, IN_DIM), lambda i: (i, 0)),   # x: streamed tiles
            resident(w1), resident(b1),
            resident(w2), resident(b2),
            resident(w3), resident(b3),
            resident(w4), resident(b4),
        ],
        out_specs=pl.BlockSpec((tb, OUT_DIM), lambda i: (i, 0)),
        compiler_params=pltpu.CompilerParams(
            dimension_semantics=("parallel",)),
        cost_estimate=cost,
    )(x, w1, b1, w2, b2, w3, b3, w4, b4)

    return out


def init_params(key):
    """Mimics nn.Linear's U(-1/sqrt(fan_in), +1/sqrt(fan_in)) init.

    w1..w3 stored as [in, out] bf16 for the MXU; the output layer's weight is
    kept as a (1, 71) f32 row (PyTorch layout) for the in-kernel VPU dot.
    Biases kept 2D ([1, out]) in f32.
    """
    dims = [(IN_DIM, H1_DIM), (H1_DIM, H2_DIM), (H2_DIM, H3_DIM), (H3_DIM, OUT_DIM)]
    params = []
    for li, (fan_in, fan_out) in enumerate(dims):
        key, kw, kb = jax.random.split(key, 3)
        bound = 1.0 / jnp.sqrt(jnp.float32(fan_in))
        w = jax.random.uniform(kw, (fan_in, fan_out), jnp.float32, -bound, bound)
        b = jax.random.uniform(kb, (1, fan_out), jnp.float32, -bound, bound)
        if li == 3:
            # Output layer: (1, 71) f32 row vector + (1, 1) bias.
            params.append((w.T, b))
        else:
            params.append((w.astype(jnp.bfloat16), b))
    return params


def deep_ref(x, params):
    """Pure-JAX f32 reference for correctness checking."""
    (w1, b1), (w2, b2), (w3, b3), (w4, b4) = params
    h = jnp.maximum(x @ w1.astype(jnp.float32) + b1, 0.0)
    h = jnp.maximum(h @ w2.astype(jnp.float32) + b2, 0.0)
    h = jnp.maximum(h @ w3.astype(jnp.float32) + b3, 0.0)
    return jax.nn.sigmoid(h @ w4.astype(jnp.float32).T + b4)


if __name__ == "__main__":
    key = jax.random.PRNGKey(0)
    key, kx = jax.random.split(key)

    # Small demo shape; B not a multiple of the tile so the partial tail block
    # and a multi-step grid (block_rows=128 -> 3 tiles) are exercised.
    B = 300
    x = jax.random.normal(kx, (B, IN_DIM), jnp.float32)
    params = init_params(key)

    out = deep_forward(x, params, block_rows=128)
    out = jax.block_until_ready(out)

    ref = deep_ref(x, params)
    assert out.shape == (B, 1), out.shape
    # bf16 matmul inputs (documented accuracy decision) -> loosened tolerance;
    # sigmoid itself is exact.
    assert jnp.max(jnp.abs(out - ref)) < 2e-2, float(jnp.max(jnp.abs(out - ref)))

    print("KERNEL_OK")
</pallas_src>

<mosaic_0001>
module attributes {stable_mosaic.version = 11 : i64} {
  func.func @deep_mlp_kernel(%arg0: i32, %arg1: memref<128x142xf32, #tpu.memory_space<vmem>>, %arg2: memref<142x142xbf16, #tpu.memory_space<vmem>>, %arg3: memref<1x142xf32, #tpu.memory_space<vmem>>, %arg4: memref<142x71xbf16, #tpu.memory_space<vmem>>, %arg5: memref<1x71xf32, #tpu.memory_space<vmem>>, %arg6: memref<71x71xbf16, #tpu.memory_space<vmem>>, %arg7: memref<1x71xf32, #tpu.memory_space<vmem>>, %arg8: memref<1x71xf32, #tpu.memory_space<vmem>>, %arg9: memref<1x1xf32, #tpu.memory_space<vmem>>, %arg10: memref<128x1xf32, #tpu.memory_space<vmem>>) attributes {dimension_semantics = [#tpu.dimension_semantics<parallel>], iteration_bounds = array<i64: 3>, scalar_prefetch = 0 : i64, scratch_operands = 0 : i64, tpu.core_type = #tpu.core_type<tc>, window_params = [{transform_indices = @transform_0, window_bounds = array<i64: 128, 142>}, {pipeline_mode = #tpu.pipeline_mode<synchronous>, transform_indices = @transform_1, window_bounds = array<i64: 142, 142>}, {pipeline_mode = #tpu.pipeline_mode<synchronous>, transform_indices = @transform_2, window_bounds = array<i64: 1, 142>}, {pipeline_mode = #tpu.pipeline_mode<synchronous>, transform_indices = @transform_3, window_bounds = array<i64: 142, 71>}, {pipeline_mode = #tpu.pipeline_mode<synchronous>, transform_indices = @transform_4, window_bounds = array<i64: 1, 71>}, {pipeline_mode = #tpu.pipeline_mode<synchronous>, transform_indices = @transform_5, window_bounds = array<i64: 71, 71>}, {pipeline_mode = #tpu.pipeline_mode<synchronous>, transform_indices = @transform_6, window_bounds = array<i64: 1, 71>}, {pipeline_mode = #tpu.pipeline_mode<synchronous>, transform_indices = @transform_7, window_bounds = array<i64: 1, 71>}, {pipeline_mode = #tpu.pipeline_mode<synchronous>, transform_indices = @transform_8, window_bounds = array<i64: 1, 1>}, {transform_indices = @transform_9, window_bounds = array<i64: 128, 1>}]} {
    %c0 = arith.constant 0 : index
    %c0_0 = arith.constant 0 : index
    %0 = vector.load %arg1[%c0, %c0_0] : memref<128x142xf32, #tpu.memory_space<vmem>>, vector<128x142xf32>
    %1 = arith.truncf %0 : vector<128x142xf32> to vector<128x142xbf16>
    %c0_1 = arith.constant 0 : index
    %c0_2 = arith.constant 0 : index
    %2 = vector.load %arg2[%c0_1, %c0_2] : memref<142x142xbf16, #tpu.memory_space<vmem>>, vector<142x142xbf16>
    %cst = arith.constant dense<0.000000e+00> : vector<128x142xf32>
    %3 = tpu.matmul %1, %2, %cst {dimension_numbers = #tpu.dot_dimension_numbers<[1], [0], [0], [1], [0, 0, 1, 1], [], []>} : vector<128x142xbf16>, vector<142x142xbf16>, vector<128x142xf32> -> vector<128x142xf32>
    %c0_3 = arith.constant 0 : index
    %c0_4 = arith.constant 0 : index
    %4 = vector.load %arg3[%c0_3, %c0_4] : memref<1x142xf32, #tpu.memory_space<vmem>>, vector<1x142xf32>
    %5 = vector.broadcast %4 : vector<1x142xf32> to vector<128x142xf32>
    %6 = arith.addf %3, %5 : vector<128x142xf32>
    %cst_5 = arith.constant 0.000000e+00 : f32
    %7 = vector.broadcast %cst_5 : f32 to vector<128x142xf32>
    %8 = arith.maximumf %6, %7 : vector<128x142xf32>
    %9 = arith.truncf %8 : vector<128x142xf32> to vector<128x142xbf16>
    %c0_6 = arith.constant 0 : index
    %c0_7 = arith.constant 0 : index
    %10 = vector.load %arg4[%c0_6, %c0_7] : memref<142x71xbf16, #tpu.memory_space<vmem>>, vector<142x71xbf16>
    %cst_8 = arith.constant dense<0.000000e+00> : vector<128x71xf32>
    %11 = tpu.matmul %9, %10, %cst_8 {dimension_numbers = #tpu.dot_dimension_numbers<[1], [0], [0], [1], [0, 0, 1, 1], [], []>} : vector<128x142xbf16>, vector<142x71xbf16>, vector<128x71xf32> -> vector<128x71xf32>
    %c0_9 = arith.constant 0 : index
    %c0_10 = arith.constant 0 : index
    %12 = vector.load %arg5[%c0_9, %c0_10] : memref<1x71xf32, #tpu.memory_space<vmem>>, vector<1x71xf32>
    %13 = vector.broadcast %12 : vector<1x71xf32> to vector<128x71xf32>
    %14 = arith.addf %11, %13 : vector<128x71xf32>
    %cst_11 = arith.constant 0.000000e+00 : f32
    %15 = vector.broadcast %cst_11 : f32 to vector<128x71xf32>
    %16 = arith.maximumf %14, %15 : vector<128x71xf32>
    %17 = arith.truncf %16 : vector<128x71xf32> to vector<128x71xbf16>
    %c0_12 = arith.constant 0 : index
    %c0_13 = arith.constant 0 : index
    %18 = vector.load %arg6[%c0_12, %c0_13] : memref<71x71xbf16, #tpu.memory_space<vmem>>, vector<71x71xbf16>
    %cst_14 = arith.constant dense<0.000000e+00> : vector<128x71xf32>
    %19 = tpu.matmul %17, %18, %cst_14 {dimension_numbers = #tpu.dot_dimension_numbers<[1], [0], [0], [1], [0, 0, 1, 1], [], []>} : vector<128x71xbf16>, vector<71x71xbf16>, vector<128x71xf32> -> vector<128x71xf32>
    %c0_15 = arith.constant 0 : index
    %c0_16 = arith.constant 0 : index
    %20 = vector.load %arg7[%c0_15, %c0_16] : memref<1x71xf32, #tpu.memory_space<vmem>>, vector<1x71xf32>
    %21 = vector.broadcast %20 : vector<1x71xf32> to vector<128x71xf32>
    %22 = arith.addf %19, %21 : vector<128x71xf32>
    %cst_17 = arith.constant 0.000000e+00 : f32
    %23 = vector.broadcast %cst_17 : f32 to vector<128x71xf32>
    %24 = arith.maximumf %22, %23 : vector<128x71xf32>
    %c0_18 = arith.constant 0 : index
    %c0_19 = arith.constant 0 : index
    %25 = vector.load %arg8[%c0_18, %c0_19] : memref<1x71xf32, #tpu.memory_space<vmem>>, vector<1x71xf32>
    %26 = vector.broadcast %25 : vector<1x71xf32> to vector<128x71xf32>
    %27 = arith.mulf %24, %26 : vector<128x71xf32>
    %cst_20 = arith.constant dense<0.000000e+00> : vector<128xf32>
    %28 = vector.multi_reduction <add>, %27, %cst_20 [1] : vector<128x71xf32> to vector<128xf32>
    %29 = vector.shape_cast %28 : vector<128xf32> to vector<128x1xf32>
    %c0_21 = arith.constant 0 : index
    %c0_22 = arith.constant 0 : index
    %30 = vector.load %arg9[%c0_21, %c0_22] : memref<1x1xf32, #tpu.memory_space<vmem>>, vector<1x1xf32>
    %31 = vector.broadcast %30 : vector<1x1xf32> to vector<128x1xf32>
    %32 = arith.addf %29, %31 : vector<128x1xf32>
    %cst_23 = arith.constant 0.000000e+00 : f32
    %33 = vector.broadcast %cst_23 : f32 to vector<128x1xf32>
    %34 = arith.subf %33, %32 : vector<128x1xf32>
    %35 = math.exp %34 : vector<128x1xf32>
    %cst_24 = arith.constant 1.000000e+00 : f32
    %36 = vector.broadcast %cst_24 : f32 to vector<128x1xf32>
    %37 = arith.addf %36, %35 : vector<128x1xf32>
    %cst_25 = arith.constant 1.000000e+00 : f32
    %38 = vector.broadcast %cst_25 : f32 to vector<128x1xf32>
    %39 = arith.divf %38, %37 : vector<128x1xf32>
    %c0_26 = arith.constant 0 : index
    %c0_27 = arith.constant 0 : index
    %40 = vector.load %arg10[%c0_26, %c0_27] : memref<128x1xf32, #tpu.memory_space<vmem>>, vector<128x1xf32>
    tpu.vector_store %arg10[%c0_26, %c0_27], %39 {strides = array<i32>} : memref<128x1xf32, #tpu.memory_space<vmem>>, vector<128x1xf32>,
    return
  }
  func.func @transform_0(%arg0: i32) -> (i32, i32) {
    %c0_i32 = arith.constant 0 : i32
    %c0_i32_0 = arith.constant 0 : i32
    return %arg0, %c0_i32 : i32, i32
  }
  func.func @transform_1(%arg0: i32) -> (i32, i32) {
    %c0_i32 = arith.constant 0 : i32
    %c0_i32_0 = arith.constant 0 : i32
    %c0_i32_1 = arith.constant 0 : i32
    return %c0_i32, %c0_i32_0 : i32, i32
  }
  func.func @transform_2(%arg0: i32) -> (i32, i32) {
    %c0_i32 = arith.constant 0 : i32
    %c0_i32_0 = arith.constant 0 : i32
    %c0_i32_1 = arith.constant 0 : i32
    return %c0_i32, %c0_i32_0 : i32, i32
  }
  func.func @transform_3(%arg0: i32) -> (i32, i32) {
    %c0_i32 = arith.constant 0 : i32
    %c0_i32_0 = arith.constant 0 : i32
    %c0_i32_1 = arith.constant 0 : i32
    return %c0_i32, %c0_i32_0 : i32, i32
  }
  func.func @transform_4(%arg0: i32) -> (i32, i32) {
    %c0_i32 = arith.constant 0 : i32
    %c0_i32_0 = arith.constant 0 : i32
    %c0_i32_1 = arith.constant 0 : i32
    return %c0_i32, %c0_i32_0 : i32, i32
  }
  func.func @transform_5(%arg0: i32) -> (i32, i32) {
    %c0_i32 = arith.constant 0 : i32
    %c0_i32_0 = arith.constant 0 : i32
    %c0_i32_1 = arith.constant 0 : i32
    return %c0_i32, %c0_i32_0 : i32, i32
  }
  func.func @transform_6(%arg0: i32) -> (i32, i32) {
    %c0_i32 = arith.constant 0 : i32
    %c0_i32_0 = arith.constant 0 : i32
    %c0_i32_1 = arith.constant 0 : i32
    return %c0_i32, %c0_i32_0 : i32, i32
  }
  func.func @transform_7(%arg0: i32) -> (i32, i32) {
    %c0_i32 = arith.constant 0 : i32
    %c0_i32_0 = arith.constant 0 : i32
    %c0_i32_1 = arith.constant 0 : i32
    return %c0_i32, %c0_i32_0 : i32, i32
  }
  func.func @transform_8(%arg0: i32) -> (i32, i32) {
    %c0_i32 = arith.constant 0 : i32
    %c0_i32_0 = arith.constant 0 : i32
    %c0_i32_1 = arith.constant 0 : i32
    return %c0_i32, %c0_i32_0 : i32, i32
  }
  func.func @transform_9(%arg0: i32) -> (i32, i32) {
    %c0_i32 = arith.constant 0 : i32
    %c0_i32_0 = arith.constant 0 : i32
    return %arg0, %c0_i32 : i32, i32
  }
}

</mosaic_0001>

<llo_original>
// kernel: deep_forward.1
$region0: #{deep_forward.1}
  #allocation0 [shape = 'u32[]', space=smem, size = 0x4, offset = 0x4, fixed_abs, tag = 'smem constant byte address 0x4 - core index']
  #allocation1 [shape = 'u32[72,128]{1,0:T(1,128)}', space=vmem, size = 0x9000, scoped, tag = 'internal scratch']
  #allocation2 [shape = 'f32[1,1]{1,0:T(1,128)S(1)}', space=vmem, size = 0x200, scoped, tag = 'scoped memory for deep_forward.1']
  %s0 = inlined_call_operand.vmem [shape: f32[300,142], index: 0, kind: input, shape index: {}]
  %s1 = inlined_call_operand.vmem [shape: bf16[142,142], index: 1, kind: input, shape index: {}]
  %s2 = inlined_call_operand.vmem [shape: f32[1,142], index: 2, kind: input, shape index: {}]
  %s3 = inlined_call_operand.vmem [shape: bf16[142,71], index: 3, kind: input, shape index: {}]
  %s4 = inlined_call_operand.vmem [shape: f32[1,71], index: 4, kind: input, shape index: {}]
  %s5 = inlined_call_operand.vmem [shape: bf16[71,71], index: 5, kind: input, shape index: {}]
  %s6 = inlined_call_operand.vmem [shape: f32[1,71], index: 6, kind: input, shape index: {}]
  %s7 = inlined_call_operand.vmem [shape: f32[1,71], index: 7, kind: input, shape index: {}]
  %s8 = inlined_call_operand.<no memory space> [shape: f32[1,1], index: 8, kind: input, shape index: {}]
  %s9 = inlined_call_operand.vmem [shape: f32[300,1], index: 9, kind: output, shape index: {}]
  %s10 = sld [smem:[#allocation0]]
  $region117: #{deep_forward.1} parent=0
    _
  %s12 = ssub.s32 1, %s10
  %s13 = scalar_select 0, %s12, %s10
  %v14 = vstv %s8
  %15 = vst [vmem:[#allocation2] sm:$0x1] %v14
  $region1: #{deep_forward.1} parent=0
    #allocation3 [shape = 'u8[131072]{0}', space=vmem, size = 0x20000, scoped, tag = 'output window, operand 0']
    loop: start=0, step=1, limit=5
    $region2: #{deep_forward.1} parent=1 // loop_pre_header
      _
    $region3: #{deep_forward.1} parent=1 // loop_header
      %s17 = sphi 0, %s21
      %p18 = scmp.ge.s32.totalorder %s17, 5
      %s27 = sphi 0, %s29
      %s30 = sphi 0, %s27
      %s31 = sphi 0, %s30
      %s47 = sphi 0, %s31
      %s51 = sphi 0, %s51
      %s53 = sphi 0, %s51
      %s54 = sphi 0, %s53
      %s68 = sphi 0, %s54
      %s72 = sphi 0, %s72
      %s74 = sphi 0, %s72
      %s75 = sphi 0, %s74
      %s89 = sphi 0, %s75
      %s93 = sphi 0, %s93
      %s95 = sphi 0, %s93
      %s96 = sphi 0, %s95
      %s110 = sphi 0, %s96
      %s114 = sphi 0, %s114
      %s116 = sphi 0, %s114
      %s117 = sphi 0, %s116
      %s131 = sphi 0, %s117
      %s135 = sphi 0, %s135
      %s137 = sphi 0, %s135
      %s138 = sphi 0, %s137
      %s152 = sphi 0, %s138
      %s156 = sphi 0, %s156
      %s158 = sphi 0, %s156
      %s159 = sphi 0, %s158
      %s173 = sphi 0, %s159
      %s177 = sphi 0, %s177
      %s179 = sphi 0, %s177
      %s180 = sphi 0, %s179
      %s194 = sphi 0, %s180
      %s198 = sphi 0, %s198
      %s200 = sphi 0, %s198
      %s201 = sphi 0, %s200
      %s215 = sphi 0, %s201
      %s221 = sphi 0, %s223
      %s224 = sphi 0, %s221
      %s225 = sphi 0, %s224
      %s241 = sphi 0, %s225
    $region4: #{deep_forward.1} parent=1 // loop_header_branch
      %20 = sbr.rel (%p18) target = $region8
    $region5: #{deep_forward.1} parent=1 // loop_body
      %s22 = ssub.s32 %s17, 1
      %s23 = ssub.s32 %s17, 2
      %s24 = sadd.s32 %s17, 1
      %s25 = ssub.s32 %s17, %s24
      %p26 = scmp.eq.s32.totalorder %s25, 0
      %s28 = sadd.s32 %s27, 1
      %s29 = scalar_select %p26, %s27, %s28
      %p32 = pneg %p26
      %p33 = scmp.eq.s32.totalorder %s17, 2
      %p34 = por %p32, %p33
      %p35 = scmp.ne.s32.totalorder %s27, %s30
      %p36 = scmp.eq.s32.totalorder %s17, 0
      %p37 = por %p35, %p36
      %p38 = scmp.ne.s32.totalorder %s27, %s30
      %p39 = scmp.eq.s32.totalorder %s22, 2
      %p40 = por %p38, %p39
      %p41 = scmp.ne.s32.totalorder %s30, %s31
      %p42 = scmp.eq.s32.totalorder %s22, 0
      %p43 = por %p41, %p42
      %p44 = scmp.ne.s32.totalorder %s30, %s31
      %p45 = scmp.eq.s32.totalorder %s23, 2
      %p46 = por %p44, %p45
      %p48 = scmp.ne.s32.totalorder %s31, %s47
      %p49 = scmp.eq.s32.totalorder %s23, 0
      %p50 = por %p48, %p49
      %s52 = sadd.s32 %s51, 1
      %p55 = scmp.eq.s32.totalorder %s17, 2
      %p56 = scmp.ne.s32.totalorder %s51, %s53
      %p57 = scmp.eq.s32.totalorder %s17, 0
      %p58 = por %p56, %p57
      %p59 = scmp.ne.s32.totalorder %s51, %s53
      %p60 = scmp.eq.s32.totalorder %s22, 2
      %p61 = por %p59, %p60
      %p62 = scmp.ne.s32.totalorder %s53, %s54
      %p63 = scmp.eq.s32.totalorder %s22, 0
      %p64 = por %p62, %p63
      %p65 = scmp.ne.s32.totalorder %s53, %s54
      %p66 = scmp.eq.s32.totalorder %s23, 2
      %p67 = por %p65, %p66
      %p69 = scmp.ne.s32.totalorder %s54, %s68
      %p70 = scmp.eq.s32.totalorder %s23, 0
      %p71 = por %p69, %p70
      %s73 = sadd.s32 %s72, 1
      %p76 = scmp.eq.s32.totalorder %s17, 2
      %p77 = scmp.ne.s32.totalorder %s72, %s74
      %p78 = scmp.eq.s32.totalorder %s17, 0
      %p79 = por %p77, %p78
      %p80 = scmp.ne.s32.totalorder %s72, %s74
      %p81 = scmp.eq.s32.totalorder %s22, 2
      %p82 = por %p80, %p81
      %p83 = scmp.ne.s32.totalorder %s74, %s75
      %p84 = scmp.eq.s32.totalorder %s22, 0
      %p85 = por %p83, %p84
      %p86 = scmp.ne.s32.totalorder %s74, %s75
      %p87 = scmp.eq.s32.totalorder %s23, 2
      %p88 = por %p86, %p87
      %p90 = scmp.ne.s32.totalorder %s75, %s89
      %p91 = scmp.eq.s32.totalorder %s23, 0
      %p92 = por %p90, %p91
      %s94 = sadd.s32 %s93, 1
      %p97 = scmp.eq.s32.totalorder %s17, 2
      %p98 = scmp.ne.s32.totalorder %s93, %s95
      %p99 = scmp.eq.s32.totalorder %s17, 0
      %p100 = por %p98, %p99
      %p101 = scmp.ne.s32.totalorder %s93, %s95
      %p102 = scmp.eq.s32.totalorder %s22, 2
      %p103 = por %p101, %p102
      %p104 = scmp.ne.s32.totalorder %s95, %s96
      %p105 = scmp.eq.s32.totalorder %s22, 0
      %p106 = por %p104, %p105
      %p107 = scmp.ne.s32.totalorder %s95, %s96
      %p108 = scmp.eq.s32.totalorder %s23, 2
      %p109 = por %p107, %p108
      %p111 = scmp.ne.s32.totalorder %s96, %s110
      %p112 = scmp.eq.s32.totalorder %s23, 0
      %p113 = por %p111, %p112
      %s115 = sadd.s32 %s114, 1
      %p118 = scmp.eq.s32.totalorder %s17, 2
      %p119 = scmp.ne.s32.totalorder %s114, %s116
      %p120 = scmp.eq.s32.totalorder %s17, 0
      %p121 = por %p119, %p120
      %p122 = scmp.ne.s32.totalorder %s114, %s116
      %p123 = scmp.eq.s32.totalorder %s22, 2
      %p124 = por %p122, %p123
      %p125 = scmp.ne.s32.totalorder %s116, %s117
      %p126 = scmp.eq.s32.totalorder %s22, 0
      %p127 = por %p125, %p126
      %p128 = scmp.ne.s32.totalorder %s116, %s117
      %p129 = scmp.eq.s32.totalorder %s23, 2
      %p130 = por %p128, %p129
      %p132 = scmp.ne.s32.totalorder %s117, %s131
      %p133 = scmp.eq.s32.totalorder %s23, 0
      %p134 = por %p132, %p133
      %s136 = sadd.s32 %s135, 1
      %p139 = scmp.eq.s32.totalorder %s17, 2
      %p140 = scmp.ne.s32.totalorder %s135, %s137
      %p141 = scmp.eq.s32.totalorder %s17, 0
      %p142 = por %p140, %p141
      %p143 = scmp.ne.s32.totalorder %s135, %s137
      %p144 = scmp.eq.s32.totalorder %s22, 2
      %p145 = por %p143, %p144
      %p146 = scmp.ne.s32.totalorder %s137, %s138
      %p147 = scmp.eq.s32.totalorder %s22, 0
      %p148 = por %p146, %p147
      %p149 = scmp.ne.s32.totalorder %s137, %s138
      %p150 = scmp.eq.s32.totalorder %s23, 2
      %p151 = por %p149, %p150
      %p153 = scmp.ne.s32.totalorder %s138, %s152
      %p154 = scmp.eq.s32.totalorder %s23, 0
      %p155 = por %p153, %p154
      %s157 = sadd.s32 %s156, 1
      %p160 = scmp.eq.s32.totalorder %s17, 2
      %p161 = scmp.ne.s32.totalorder %s156, %s158
      %p162 = scmp.eq.s32.totalorder %s17, 0
      %p163 = por %p161, %p162
      %p164 = scmp.ne.s32.totalorder %s156, %s158
      %p165 = scmp.eq.s32.totalorder %s22, 2
      %p166 = por %p164, %p165
      %p167 = scmp.ne.s32.totalorder %s158, %s159
      %p168 = scmp.eq.s32.totalorder %s22, 0
      %p169 = por %p167, %p168
      %p170 = scmp.ne.s32.totalorder %s158, %s159
      %p171 = scmp.eq.s32.totalorder %s23, 2
      %p172 = por %p170, %p171
      %p174 = scmp.ne.s32.totalorder %s159, %s173
      %p175 = scmp.eq.s32.totalorder %s23, 0
      %p176 = por %p174, %p175
      %s178 = sadd.s32 %s177, 1
      %p181 = scmp.eq.s32.totalorder %s17, 2
      %p182 = scmp.ne.s32.totalorder %s177, %s179
      %p183 = scmp.eq.s32.totalorder %s17, 0
      %p184 = por %p182, %p183
      %p185 = scmp.ne.s32.totalorder %s177, %s179
      %p186 = scmp.eq.s32.totalorder %s22, 2
      %p187 = por %p185, %p186
      %p188 = scmp.ne.s32.totalorder %s179, %s180
      %p189 = scmp.eq.s32.totalorder %s22, 0
      %p190 = por %p188, %p189
      %p191 = scmp.ne.s32.totalorder %s179, %s180
      %p192 = scmp.eq.s32.totalorder %s23, 2
      %p193 = por %p191, %p192
      %p195 = scmp.ne.s32.totalorder %s180, %s194
      %p196 = scmp.eq.s32.totalorder %s23, 0
      %p197 = por %p195, %p196
      %s199 = sadd.s32 %s198, 1
      %p202 = scmp.eq.s32.totalorder %s17, 2
      %p203 = scmp.ne.s32.totalorder %s198, %s200
      %p204 = scmp.eq.s32.totalorder %s17, 0
      %p205 = por %p203, %p204
      %p206 = scmp.ne.s32.totalorder %s198, %s200
      %p207 = scmp.eq.s32.totalorder %s22, 2
      %p208 = por %p206, %p207
      %p209 = scmp.ne.s32.totalorder %s200, %s201
      %p210 = scmp.eq.s32.totalorder %s22, 0
      %p211 = por %p209, %p210
      %p212 = scmp.ne.s32.totalorder %s200, %s201
      %p213 = scmp.eq.s32.totalorder %s23, 2
      %p214 = por %p212, %p213
      %p216 = scmp.ne.s32.totalorder %s201, %s215
      %p217 = scmp.eq.s32.totalorder %s23, 0
      %p218 = por %p216, %p217
      %s219 = ssub.s32 %s17, %s24
      %p220 = scmp.eq.s32.totalorder %s219, 0
      %s222 = sadd.s32 %s221, 1
      %s223 = scalar_select %p220, %s221, %s222
      %p226 = pneg %p220
      %p227 = scmp.eq.s32.totalorder %s17, 2
      %p228 = por %p226, %p227
      %p229 = scmp.ne.s32.totalorder %s221, %s224
      %p230 = scmp.eq.s32.totalorder %s17, 0
      %p231 = por %p229, %p230
      %p232 = scmp.ne.s32.totalorder %s221, %s224
      %p233 = scmp.eq.s32.totalorder %s22, 2
      %p234 = por %p232, %p233
      %p235 = scmp.ne.s32.totalorder %s224, %s225
      %p236 = scmp.eq.s32.totalorder %s22, 0
      %p237 = por %p235, %p236
      %p238 = scmp.ne.s32.totalorder %s224, %s225
      %p239 = scmp.eq.s32.totalorder %s23, 2
      %p240 = por %p238, %p239
      %p242 = scmp.ne.s32.totalorder %s225, %s241
      %p243 = scmp.eq.s32.totalorder %s23, 0
      %p244 = por %p242, %p243
      %p245 = scmp.le.s32.totalorder 1, %s17
      %p246 = scmp.lt.s32.totalorder %s17, 4
      %p247 = pnand %p245, %p246
      %p248 = pneg %p247
      // Predicated region
      $region9: #{deep_forward.1} parent=5 // pred_check
        _
      $region10: #{deep_forward.1} parent=5 // pred_check_branch
        %250 = sbr.rel (%p247) target = $region12
      $region11: #{deep_forward.1} parent=5 // pred_region
        %s251 = ssub.s32 %s17, 1
        // Predicated region
        $region13: #{deep_forward.1} parent=11 // pred_check
          %p252 = pneg %p64
        $region14: #{deep_forward.1} parent=11 // pred_check_branch
          %254 = sbr.rel (%p252) target = $region16
        $region15: #{deep_forward.1} parent=11 // pred_region
          _
        $region16: #{deep_forward.1} parent=11 // pred_fallthru
          _
        // Predicated region
        $region17: #{deep_forward.1} parent=11 // pred_check
          %p255 = pneg %p85
        $region18: #{deep_forward.1} parent=11 // pred_check_branch
          %257 = sbr.rel (%p255) target = $region20
        $region19: #{deep_forward.1} parent=11 // pred_region
          _
        $region20: #{deep_forward.1} parent=11 // pred_fallthru
          _
        // Predicated region
        $region21: #{deep_forward.1} parent=11 // pred_check
          %p258 = pneg %p106
        $region22: #{deep_forward.1} parent=11 // pred_check_branch
          %260 = sbr.rel (%p258) target = $region24
        $region23: #{deep_forward.1} parent=11 // pred_region
          _
        $region24: #{deep_forward.1} parent=11 // pred_fallthru
          _
        // Predicated region
        $region25: #{deep_forward.1} parent=11 // pred_check
          %p261 = pneg %p127
        $region26: #{deep_forward.1} parent=11 // pred_check_branch
          %263 = sbr.rel (%p261) target = $region28
        $region27: #{deep_forward.1} parent=11 // pred_region
          _
        $region28: #{deep_forward.1} parent=11 // pred_fallthru
          _
        // Predicated region
        $region29: #{deep_forward.1} parent=11 // pred_check
          %p264 = pneg %p148
        $region30: #{deep_forward.1} parent=11 // pred_check_branch
          %266 = sbr.rel (%p264) target = $region32
        $region31: #{deep_forward.1} parent=11 // pred_region
          _
        $region32: #{deep_forward.1} parent=11 // pred_fallthru
          _
        // Predicated region
        $region33: #{deep_forward.1} parent=11 // pred_check
          %p267 = pneg %p169
        $region34: #{deep_forward.1} parent=11 // pred_check_branch
          %269 = sbr.rel (%p267) target = $region36
        $region35: #{deep_forward.1} parent=11 // pred_region
          _
        $region36: #{deep_forward.1} parent=11 // pred_fallthru
          _
        // Predicated region
        $region37: #{deep_forward.1} parent=11 // pred_check
          %p270 = pneg %p190
        $region38: #{deep_forward.1} parent=11 // pred_check_branch
          %272 = sbr.rel (%p270) target = $region40
        $region39: #{deep_forward.1} parent=11 // pred_region
          _
        $region40: #{deep_forward.1} parent=11 // pred_fallthru
          _
        // Predicated region
        $region41: #{deep_forward.1} parent=11 // pred_check
          %p273 = pneg %p211
        $region42: #{deep_forward.1} parent=11 // pred_check_branch
          %275 = sbr.rel (%p273) target = $region44
        $region43: #{deep_forward.1} parent=11 // pred_region
          _
        $region44: #{deep_forward.1} parent=11 // pred_fallthru
          _
      $region12: #{deep_forward.1} parent=5 // pred_fallthru
        _
      %p276 = scmp.lt.s32.totalorder %s17, 3
      // Predicated region
      $region45: #{deep_forward.1} parent=5 // pred_check
        %p277 = pneg %p276
      $region46: #{deep_forward.1} parent=5 // pred_check_branch
        %279 = sbr.rel (%p277) target = $region48
      $region47: #{deep_forward.1} parent=5 // pred_region
        // Predicated region
        $region49: #{deep_forward.1} parent=47 // pred_check
          %p280 = pneg %p37
        $region50: #{deep_forward.1} parent=47 // pred_check_branch
          %282 = sbr.rel (%p280) target = $region52
        $region51: #{deep_forward.1} parent=47 // pred_region
          %s283 = smul.u32 16, %s17
          %s284 = ssub.s32 38, %s283
          %p285 = scmp.lt.s32.totalorder %s284, 16
          %s286 = scalar_select %p285, %s284, 16
          %s287 = smul.u32 8, %s286
          %s288 = smul.u32 %s287, 2
          %p289 = scmp.lt.s32.totalorder %s283, 37
          %s290 = scalar_select %p289, %s283, 37
          %s291 = smul.addr %s290, 2
          %s292 = smul.addr %s291, 8
          %s293 = scalar_lea.vmem %s0, %s292
          %s294 = smul.u32 16, %s17
          %s295 = ssub.s32 38, %s294
          %p296 = scmp.lt.s32.totalorder %s295, 16
          %s297 = scalar_select %p296, %s295, 16
          %s298 = smul.u32 8, %s297
          %s299 = smul.u32 %s298, 2
        $region52: #{deep_forward.1} parent=47 // pred_fallthru
          _
      $region48: #{deep_forward.1} parent=5 // pred_fallthru
        _
      %p300 = scmp.le.s32.totalorder 1, %s17
      %p301 = scmp.lt.s32.totalorder %s17, 4
      %p302 = pnand %p300, %p301
      %p303 = pneg %p302
      // Predicated region
      $region53: #{deep_forward.1} parent=5 // pred_check
        _
      $region54: #{deep_forward.1} parent=5 // pred_check_branch
        %305 = sbr.rel (%p302) target = $region56
      $region55: #{deep_forward.1} parent=5 // pred_region
        %s306 = ssub.s32 %s17, 1
        %s307 = smul.u32 16, %s22
        %s308 = ssub.s32 38, %s307
        %p309 = scmp.lt.s32.totalorder %s308, 16
        %s310 = scalar_select %p309, %s308, 16
        %s311 = smul.u32 8, %s310
        %s312 = smul.u32 %s311, 2
        %p313 = scmp.lt.s32.totalorder %s307, 37
        %s314 = scalar_select %p313, %s307, 37
        %s315 = smul.addr %s314, 2
        %s316 = smul.addr %s315, 8
        %s317 = scalar_lea.vmem %s0, %s316
        %p318 = pneg %p43
        %p319 = pneg %p40
        %p320 = pneg %p64
        %p321 = pneg %p61
        %p322 = pneg %p85
        %p323 = pneg %p82
        %p324 = pneg %p106
        %p325 = pneg %p103
        %p326 = pneg %p127
        %p327 = pneg %p124
        %p328 = pneg %p148
        %p329 = pneg %p145
        %p330 = pneg %p169
        %p331 = pneg %p166
        %p332 = pneg %p190
        %p333 = pneg %p187
        %p334 = pneg %p211
        %p335 = pneg %p208
        %p336 = pneg %p237
        %p337 = pneg %p234
        %s338 = sand.u32 %s224, 1
        %s339 = sand.u32 %s224, 1
        %s340 = smul.addr %s339, 128
        %s341 = scalar_lea.vmem [#allocation3], %s340
        %s342 = smul.u32 16, %s22
        %s343 = ssub.s32 38, %s342
        %p344 = scmp.lt.s32.totalorder %s343, 16
        %s345 = scalar_select %p344, %s343, 16
        %s346 = smul.u32 8, %s345
        %s347 = smul.u32 %s346, 2
        %p348 = scmp.lt.s32.totalorder %s342, 37
        %s349 = scalar_select %p348, %s342, 37
        %s350 = smul.addr %s349, 2
        %s351 = smul.addr %s350, 8
        %s352 = scalar_lea.vmem %s0, %s351
        %s353 = smul.u32 16, %s22
        %s354 = ssub.s32 38, %s353
        %p355 = scmp.lt.s32.totalorder %s354, 16
        %s356 = scalar_select %p355, %s354, 16
        %s357 = smul.u32 8, %s356
        %s358 = smul.u32 %s357, 2
        %s359 = smul.u32 16, %s22
        %s360 = ssub.s32 38, %s359
        %p361 = scmp.lt.s32.totalorder %s360, 16
        %s362 = scalar_select %p361, %s360, 16
        %s363 = smul.u32 8, %s362
        %v365 = vld [vmem:[%s352] sm:$0xff]
        %v366 = vld [vmem:[%s352 + $0x8] sm:$0xff]
        %v367 = vld [vmem:[%s352 + $0x10] sm:$0xff]
        %v368 = vld [vmem:[%s352 + $0x18] sm:$0xff]
        %v369 = vld [vmem:[%s352 + $0x20] sm:$0xff]
        %v370 = vld [vmem:[%s352 + $0x28] sm:$0xff]
        %v371 = vld [vmem:[%s352 + $0x30] sm:$0xff]
        %v372 = vld [vmem:[%s352 + $0x38] sm:$0xff]
        %v373 = vld [vmem:[%s352 + $0x40] sm:$0xff]
        %v374 = vld [vmem:[%s352 + $0x48] sm:$0xff]
        %v375 = vld [vmem:[%s352 + $0x50] sm:$0xff]
        %v376 = vld [vmem:[%s352 + $0x58] sm:$0xff]
        %v377 = vld [vmem:[%s352 + $0x60] sm:$0xff]
        %v378 = vld [vmem:[%s352 + $0x68] sm:$0xff]
        %v379 = vld [vmem:[%s352 + $0x70] sm:$0xff]
        %v380 = vld [vmem:[%s352 + $0x78] sm:$0xff]
        %v381 = vld [vmem:[%s352 + $0x80] sm:$0xff]
        %v382 = vld [vmem:[%s352 + $0x88] sm:$0xff]
        %v383 = vld [vmem:[%s352 + $0x90] sm:$0xff]
        %v384 = vld [vmem:[%s352 + $0x98] sm:$0xff]
        %v385 = vld [vmem:[%s352 + $0xa0] sm:$0xff]
        %v386 = vld [vmem:[%s352 + $0xa8] sm:$0xff]
        %v387 = vld [vmem:[%s352 + $0xb0] sm:$0xff]
        %v388 = vld [vmem:[%s352 + $0xb8] sm:$0xff]
        %v389 = vld [vmem:[%s352 + $0xc0] sm:$0xff]
        %v390 = vld [vmem:[%s352 + $0xc8] sm:$0xff]
        %v391 = vld [vmem:[%s352 + $0xd0] sm:$0xff]
        %v392 = vld [vmem:[%s352 + $0xd8] sm:$0xff]
        %v393 = vld [vmem:[%s352 + $0xe0] sm:$0xff]
        %v394 = vld [vmem:[%s352 + $0xe8] sm:$0xff]
        %v395 = vld [vmem:[%s352 + $0xf0] sm:$0xff]
        %v396 = vld [vmem:[%s352 + $0xf8] sm:$0xff]
        %v397 = vpack.c.bf16 %v367, %v365
        %v398 = vpack.c.bf16 %v368, %v366
        %v399 = vpack.c.bf16 %v371, %v369
        %v400 = vpack.c.bf16 %v372, %v370
        %v401 = vpack.c.bf16 %v375, %v373
        %v402 = vpack.c.bf16 %v376, %v374
        %v403 = vpack.c.bf16 %v379, %v377
        %v404 = vpack.c.bf16 %v380, %v378
        %v405 = vpack.c.bf16 %v383, %v381
        %v406 = vpack.c.bf16 %v384, %v382
        %v407 = vpack.c.bf16 %v387, %v385
        %v408 = vpack.c.bf16 %v388, %v386
        %v409 = vpack.c.bf16 %v391, %v389
        %v410 = vpack.c.bf16 %v392, %v390
        %v411 = vpack.c.bf16 %v395, %v393
        %v412 = vpack.c.bf16 %v396, %v394
        %v413 = vld [vmem:[%s1] sm:$0xff]
        %v414 = vld [vmem:[%s1 + $0x8] sm:$0xff]
        %v415 = vld [vmem:[%s1 + $0x10] sm:$0xff]
        %v416 = vld [vmem:[%s1 + $0x18] sm:$0xff]
        %v417 = vld [vmem:[%s1 + $0x20] sm:$0xff]
        %v418 = vld [vmem:[%s1 + $0x28] sm:$0xff]
        %v419 = vld [vmem:[%s1 + $0x30] sm:$0xff]
        %v420 = vld [vmem:[%s1 + $0x38] sm:$0xff]
        %v421 = vld [vmem:[%s1 + $0x40] sm:$0xff]
        %v422 = vld [vmem:[%s1 + $0x48] sm:$0xff]
        %v423 = vld [vmem:[%s1 + $0x50] sm:$0xff]
        %v424 = vld [vmem:[%s1 + $0x58] sm:$0xff]
        %v425 = vld [vmem:[%s1 + $0x60] sm:$0xff]
        %v426 = vld [vmem:[%s1 + $0x68] sm:$0xff]
        %v427 = vld [vmem:[%s1 + $0x70] sm:$0xff]
        %v428 = vld [vmem:[%s1 + $0x78] sm:$0xff]
        %v429 = vld [vmem:[%s1 + $0x80] sm:$0xff]
        %v430 = vld [vmem:[%s1 + $0x88] sm:$0x77]
        %v431 = vld [vmem:[%s2] sm:$0x3]
        %v433 = vperm.slane %v431, 0
        %v434 = vperm.slane %v431, 1
        %v455 = vunpack.c.l.b16 %v413
        %v456 = vunpack.c.h.b16 %v413
        %v457 = vunpack.c.l.b16 %v414
        %v458 = vunpack.c.h.b16 %v414
        %v459 = vunpack.c.l.b16 %v415
        %v460 = vunpack.c.h.b16 %v415
        %v461 = vunpack.c.l.b16 %v416
        %v462 = vunpack.c.h.b16 %v416
        %v463 = vunpack.c.l.b16 %v417
        %v464 = vunpack.c.h.b16 %v417
        %v465 = vunpack.c.l.b16 %v418
        %v466 = vunpack.c.h.b16 %v418
        %v467 = vunpack.c.l.b16 %v419
        %v468 = vunpack.c.h.b16 %v419
        %v469 = vunpack.c.l.b16 %v420
        %v470 = vunpack.c.h.b16 %v420
        %v471 = vunpack.c.l.b16 %v421
        %v472 = vunpack.c.h.b16 %v421
        %v473 = vunpack.c.l.b16 %v422
        %v474 = vunpack.c.h.b16 %v422
        %v475 = vunpack.c.l.b16 %v423
        %v476 = vunpack.c.h.b16 %v423
        %v477 = vunpack.c.l.b16 %v424
        %v478 = vunpack.c.h.b16 %v424
        %v479 = vunpack.c.l.b16 %v425
        %v480 = vunpack.c.h.b16 %v425
        %v481 = vunpack.c.l.b16 %v426
        %v482 = vunpack.c.h.b16 %v426
        %v483 = vunpack.c.l.b16 %v427
        %v484 = vunpack.c.h.b16 %v427
        %v485 = vunpack.c.l.b16 %v428
        %v486 = vunpack.c.h.b16 %v428
        %v487 = vunpack.c.l.b16 %v429
        %v488 = vunpack.c.h.b16 %v429
        %v489 = vunpack.c.l.b16 %v430
        %v490 = vunpack.c.h.b16 %v430
        %v491 = vpack.c.b16 %v457, %v455
        %v492 = vpack.c.b16 %v458, %v456
        %v493 = vpack.c.b16 %v461, %v459
        %v494 = vpack.c.b16 %v462, %v460
        %v495 = vpack.c.b16 %v465, %v463
        %v496 = vpack.c.b16 %v466, %v464
        %v497 = vpack.c.b16 %v469, %v467
        %v498 = vpack.c.b16 %v470, %v468
        %v499 = vpack.c.b16 %v473, %v471
        %v500 = vpack.c.b16 %v474, %v472
        %v501 = vpack.c.b16 %v477, %v475
        %v502 = vpack.c.b16 %v478, %v476
        %v503 = vpack.c.b16 %v481, %v479
        %v504 = vpack.c.b16 %v482, %v480
        %v505 = vpack.c.b16 %v485, %v483
        %v506 = vpack.c.b16 %v486, %v484
        %v507 = vpack.c.b16 %v489, %v487
        %v508 = vpack.c.b16 %v490, %v488
        %vm525 = vcmask 113664
        %v527 = vsel %vm525, %v398, 0
        %v530 = vsel %vm525, %v400, 0
        %v533 = vsel %vm525, %v402, 0
        %v536 = vsel %vm525, %v404, 0
        %v539 = vsel %vm525, %v406, 0
        %v542 = vsel %vm525, %v408, 0
        %v545 = vsel %vm525, %v410, 0
        %v548 = vsel %vm525, %v412, 0
        %vm550 = vcmask 1046528
        %v552 = vsel %vm550, %v507, 0
        %v555 = vsel %vm550, %v508, 0
        %557 = vmatpush.bf16.msra.mxu0 %v505
        %558 = vmatpush.bf16.msra.mxu0 %v503
        %559 = vmatpush.bf16.msra.mxu0 %v501
        %560 = vmatpush.bf16.msra.mxu0 %v499
        %561 = vmatpush.bf16.msra.mxu0 %v497
        %562 = vmatpush.bf16.msra.mxu0 %v495
        %563 = vmatpush.bf16.msra.mxu0 %v493
        %564 = vmatpush.bf16.msra.mxu0 %v491
        %565 = vmatmul.bf16.gmra.mxu0 %v397
        %v566 = vpop.f32.mrf.mxu0
        %v567 = vadd.f32 %v433, %v566
        %v568 = vpop.f32.mrf.mxu0
        %v569 = vadd.f32 %v433, %v568
        %570 = vmatmul.bf16.gmra.mxu0 %v399
        %v571 = vpop.f32.mrf.mxu0
        %v572 = vadd.f32 %v433, %v571
        %v573 = vpop.f32.mrf.mxu0
        %v574 = vadd.f32 %v433, %v573
        %575 = vmatmul.bf16.gmra.mxu0 %v401
        %v576 = vpop.f32.mrf.mxu0
        %v577 = vadd.f32 %v433, %v576
        %v578 = vpop.f32.mrf.mxu0
        %v579 = vadd.f32 %v433, %v578
        %580 = vmatmul.bf16.gmra.mxu0 %v403
        %v581 = vpop.f32.mrf.mxu0
        %v582 = vadd.f32 %v433, %v581
        %v583 = vpop.f32.mrf.mxu0
        %v584 = vadd.f32 %v433, %v583
        %585 = vmatmul.bf16.gmra.mxu0 %v405
        %v586 = vpop.f32.mrf.mxu0
        %v587 = vadd.f32 %v433, %v586
        %v588 = vpop.f32.mrf.mxu0
        %v589 = vadd.f32 %v433, %v588
        %590 = vmatmul.bf16.gmra.mxu0 %v407
        %v591 = vpop.f32.mrf.mxu0
        %v592 = vadd.f32 %v433, %v591
        %v593 = vpop.f32.mrf.mxu0
        %v594 = vadd.f32 %v433, %v593
        %595 = vmatmul.bf16.gmra.mxu0 %v409
        %v596 = vpop.f32.mrf.mxu0
        %v597 = vadd.f32 %v433, %v596
        %v598 = vpop.f32.mrf.mxu0
        %v599 = vadd.f32 %v433, %v598
        %600 = vmatmul.bf16.gmra.mxu0 %v411
        %v601 = vpop.f32.mrf.mxu0
        %v602 = vadd.f32 %v433, %v601
        %v603 = vpop.f32.mrf.mxu0
        %v604 = vadd.f32 %v433, %v603
        %605 = vdwg.mxu0
        %606 = vmatpush.bf16.msra.mxu0 0
        %607 = vmatpush.bf16.msra.mxu0 0
        %608 = vmatpush.bf16.msra.mxu0 0
        %609 = vmatpush.bf16.msra.mxu0 0
        %610 = vmatpush.bf16.msra.mxu0 0
        %611 = vmatpush.bf16.msra.mxu0 0
        %612 = vmatpush.bf16.msra.mxu0 0
        %613 = vmatpush.bf16.msra.mxu0 %v552
        %614 = vmatmul.bf16.gmra.mxu0 %v527
        %v615 = vpop.f32.mrf.mxu0
        %v616 = vadd.f32 %v567, %v615
        %v617 = vpop.f32.mrf.mxu0
        %v618 = vadd.f32 %v569, %v617
        %619 = vmatmul.bf16.gmra.mxu0 %v530
        %v620 = vpop.f32.mrf.mxu0
        %v621 = vadd.f32 %v572, %v620
        %v622 = vpop.f32.mrf.mxu0
        %v623 = vadd.f32 %v574, %v622
        %624 = vmatmul.bf16.gmra.mxu0 %v533
        %v625 = vpop.f32.mrf.mxu0
        %v626 = vadd.f32 %v577, %v625
        %v627 = vpop.f32.mrf.mxu0
        %v628 = vadd.f32 %v579, %v627
        %629 = vmatmul.bf16.gmra.mxu0 %v536
        %v630 = vpop.f32.mrf.mxu0
        %v631 = vadd.f32 %v582, %v630
        %v632 = vpop.f32.mrf.mxu0
        %v633 = vadd.f32 %v584, %v632
        %634 = vmatmul.bf16.gmra.mxu0 %v539
        %v635 = vpop.f32.mrf.mxu0
        %v636 = vadd.f32 %v587, %v635
        %v637 = vpop.f32.mrf.mxu0
        %v638 = vadd.f32 %v589, %v637
        %639 = vmatmul.bf16.gmra.mxu0 %v542
        %v640 = vpop.f32.mrf.mxu0
        %v641 = vadd.f32 %v592, %v640
        %v642 = vpop.f32.mrf.mxu0
        %v643 = vadd.f32 %v594, %v642
        %644 = vmatmul.bf16.gmra.mxu0 %v545
        %v645 = vpop.f32.mrf.mxu0
        %v646 = vadd.f32 %v597, %v645
        %v647 = vpop.f32.mrf.mxu0
        %v648 = vadd.f32 %v599, %v647
        %649 = vmatmul.bf16.gmra.mxu0 %v548
        %v650 = vpop.f32.mrf.mxu0
        %v651 = vadd.f32 %v602, %v650
        %v652 = vpop.f32.mrf.mxu0
        %v653 = vadd.f32 %v604, %v652
        %654 = vdwg.mxu0
        %655 = vmatpush.bf16.msra.mxu0 %v506
        %656 = vmatpush.bf16.msra.mxu0 %v504
        %657 = vmatpush.bf16.msra.mxu0 %v502
        %658 = vmatpush.bf16.msra.mxu0 %v500
        %659 = vmatpush.bf16.msra.mxu0 %v498
        %660 = vmatpush.bf16.msra.mxu0 %v496
        %661 = vmatpush.bf16.msra.mxu0 %v494
        %662 = vmatpush.bf16.msra.mxu0 %v492
        %663 = vmatmul.bf16.gmra.mxu0 %v397
        %v664 = vpop.f32.mrf.mxu0
        %v665 = vadd.f32 %v434, %v664
        %v666 = vpop.f32.mrf.mxu0
        %v667 = vadd.f32 %v434, %v666
        %668 = vmatmul.bf16.gmra.mxu0 %v399
        %v669 = vpop.f32.mrf.mxu0
        %v670 = vadd.f32 %v434, %v669
        %v671 = vpop.f32.mrf.mxu0
        %v672 = vadd.f32 %v434, %v671
        %673 = vmatmul.bf16.gmra.mxu0 %v401
        %v674 = vpop.f32.mrf.mxu0
        %v675 = vadd.f32 %v434, %v674
        %v676 = vpop.f32.mrf.mxu0
        %v677 = vadd.f32 %v434, %v676
        %678 = vmatmul.bf16.gmra.mxu0 %v403
        %v679 = vpop.f32.mrf.mxu0
        %v680 = vadd.f32 %v434, %v679
        %v681 = vpop.f32.mrf.mxu0
        %v682 = vadd.f32 %v434, %v681
        %683 = vmatmul.bf16.gmra.mxu0 %v405
        %v684 = vpop.f32.mrf.mxu0
        %v685 = vadd.f32 %v434, %v684
        %v686 = vpop.f32.mrf.mxu0
        %v687 = vadd.f32 %v434, %v686
        %688 = vmatmul.bf16.gmra.mxu0 %v407
        %v689 = vpop.f32.mrf.mxu0
        %v690 = vadd.f32 %v434, %v689
        %v691 = vpop.f32.mrf.mxu0
        %v692 = vadd.f32 %v434, %v691
        %693 = vmatmul.bf16.gmra.mxu0 %v409
        %v694 = vpop.f32.mrf.mxu0
        %v695 = vadd.f32 %v434, %v694
        %v696 = vpop.f32.mrf.mxu0
        %v697 = vadd.f32 %v434, %v696
        %698 = vmatmul.bf16.gmra.mxu0 %v411
        %v699 = vpop.f32.mrf.mxu0
        %v700 = vadd.f32 %v434, %v699
        %v701 = vpop.f32.mrf.mxu0
        %v702 = vadd.f32 %v434, %v701
        %703 = vdwg.mxu0
        %704 = vmatpush.bf16.msra.mxu0 0
        %705 = vmatpush.bf16.msra.mxu0 0
        %706 = vmatpush.bf16.msra.mxu0 0
        %707 = vmatpush.bf16.msra.mxu0 0
        %708 = vmatpush.bf16.msra.mxu0 0
        %709 = vmatpush.bf16.msra.mxu0 0
        %710 = vmatpush.bf16.msra.mxu0 0
        %711 = vmatpush.bf16.msra.mxu0 %v555
        %712 = vmatmul.bf16.gmra.mxu0 %v527
        %v713 = vpop.f32.mrf.mxu0
        %v714 = vadd.f32 %v665, %v713
        %v715 = vpop.f32.mrf.mxu0
        %v716 = vadd.f32 %v667, %v715
        %717 = vmatmul.bf16.gmra.mxu0 %v530
        %v718 = vpop.f32.mrf.mxu0
        %v719 = vadd.f32 %v670, %v718
        %v720 = vpop.f32.mrf.mxu0
        %v721 = vadd.f32 %v672, %v720
        %722 = vmatmul.bf16.gmra.mxu0 %v533
        %v723 = vpop.f32.mrf.mxu0
        %v724 = vadd.f32 %v675, %v723
        %v725 = vpop.f32.mrf.mxu0
        %v726 = vadd.f32 %v677, %v725
        %727 = vmatmul.bf16.gmra.mxu0 %v536
        %v728 = vpop.f32.mrf.mxu0
        %v729 = vadd.f32 %v680, %v728
        %v730 = vpop.f32.mrf.mxu0
        %v731 = vadd.f32 %v682, %v730
        %732 = vmatmul.bf16.gmra.mxu0 %v539
        %v733 = vpop.f32.mrf.mxu0
        %v734 = vadd.f32 %v685, %v733
        %v735 = vpop.f32.mrf.mxu0
        %v736 = vadd.f32 %v687, %v735
        %737 = vmatmul.bf16.gmra.mxu0 %v542
        %v738 = vpop.f32.mrf.mxu0
        %v739 = vadd.f32 %v690, %v738
        %v740 = vpop.f32.mrf.mxu0
        %v741 = vadd.f32 %v692, %v740
        %742 = vmatmul.bf16.gmra.mxu0 %v545
        %v743 = vpop.f32.mrf.mxu0
        %v744 = vadd.f32 %v695, %v743
        %v745 = vpop.f32.mrf.mxu0
        %v746 = vadd.f32 %v697, %v745
        %747 = vmatmul.bf16.gmra.mxu0 %v548
        %v748 = vpop.f32.mrf.mxu0
        %v749 = vadd.f32 %v700, %v748
        %v750 = vpop.f32.mrf.mxu0
        %v751 = vadd.f32 %v702, %v750
        %752 = vdwg.mxu0
        %v753 = vmax.f32 %v616, 0.0
        %v754 = vmax.f32 %v714, 0.0
        %v755 = vmax.f32 %v618, 0.0
        %v756 = vmax.f32 %v716, 0.0
        %v757 = vmax.f32 %v621, 0.0
        %v758 = vmax.f32 %v719, 0.0
        %v759 = vmax.f32 %v623, 0.0
        %v760 = vmax.f32 %v721, 0.0
        %v761 = vmax.f32 %v626, 0.0
        %v762 = vmax.f32 %v724, 0.0
        %v763 = vmax.f32 %v628, 0.0
        %v764 = vmax.f32 %v726, 0.0
        %v765 = vmax.f32 %v631, 0.0
        %v766 = vmax.f32 %v729, 0.0
        %v767 = vmax.f32 %v633, 0.0
        %v768 = vmax.f32 %v731, 0.0
        %v769 = vmax.f32 %v636, 0.0
        %v770 = vmax.f32 %v734, 0.0
        %v771 = vmax.f32 %v638, 0.0
        %v772 = vmax.f32 %v736, 0.0
        %v773 = vmax.f32 %v641, 0.0
        %v774 = vmax.f32 %v739, 0.0
        %v775 = vmax.f32 %v643, 0.0
        %v776 = vmax.f32 %v741, 0.0
        %v777 = vmax.f32 %v646, 0.0
        %v778 = vmax.f32 %v744, 0.0
        %v779 = vmax.f32 %v648, 0.0
        %v780 = vmax.f32 %v746, 0.0
        %v781 = vmax.f32 %v651, 0.0
        %v782 = vmax.f32 %v749, 0.0
        %v783 = vmax.f32 %v653, 0.0
        %v784 = vmax.f32 %v751, 0.0
        %v785 = vpack.c.bf16 %v755, %v753
        %v786 = vpack.c.bf16 %v756, %v754
        %v787 = vpack.c.bf16 %v759, %v757
        %v788 = vpack.c.bf16 %v760, %v758
        %v789 = vpack.c.bf16 %v763, %v761
        %v790 = vpack.c.bf16 %v764, %v762
        %v791 = vpack.c.bf16 %v767, %v765
        %v792 = vpack.c.bf16 %v768, %v766
        %v793 = vpack.c.bf16 %v771, %v769
        %v794 = vpack.c.bf16 %v772, %v770
        %v795 = vpack.c.bf16 %v775, %v773
        %v796 = vpack.c.bf16 %v776, %v774
        %v797 = vpack.c.bf16 %v779, %v777
        %v798 = vpack.c.bf16 %v780, %v778
        %v799 = vpack.c.bf16 %v783, %v781
        %v800 = vpack.c.bf16 %v784, %v782
        %v801 = vld [vmem:[%s3] sm:$0xf]
        %v802 = vld [vmem:[%s3 + $0x4] sm:$0xf]
        %v803 = vld [vmem:[%s3 + $0x8] sm:$0xf]
        %v804 = vld [vmem:[%s3 + $0xc] sm:$0xf]
        %v805 = vld [vmem:[%s3 + $0x10] sm:$0xf]
        %v806 = vld [vmem:[%s3 + $0x14] sm:$0xf]
        %v807 = vld [vmem:[%s3 + $0x18] sm:$0xf]
        %v808 = vld [vmem:[%s3 + $0x1c] sm:$0xf]
        %v809 = vld [vmem:[%s3 + $0x20] sm:$0xf]
        %v810 = vld [vmem:[%s3 + $0x24] sm:$0xf]
        %v811 = vld [vmem:[%s3 + $0x28] sm:$0xf]
        %v812 = vld [vmem:[%s3 + $0x2c] sm:$0xf]
        %v813 = vld [vmem:[%s3 + $0x30] sm:$0xf]
        %v814 = vld [vmem:[%s3 + $0x34] sm:$0xf]
        %v815 = vld [vmem:[%s3 + $0x38] sm:$0xf]
        %v816 = vld [vmem:[%s3 + $0x3c] sm:$0xf]
        %v817 = vld [vmem:[%s3 + $0x40] sm:$0xf]
        %v818 = vld [vmem:[%s3 + $0x44] sm:$0x7]
        %v819 = vld [vmem:[%s4] sm:$0x1]
        %v821 = vperm.slane %v819, 0
        %v841 = vunpack.c.l.b16 %v801
        %v842 = vunpack.c.l.b16 %v802
        %v843 = vunpack.c.l.b16 %v803
        %v844 = vunpack.c.l.b16 %v804
        %v845 = vunpack.c.l.b16 %v805
        %v846 = vunpack.c.l.b16 %v806
        %v847 = vunpack.c.l.b16 %v807
        %v848 = vunpack.c.l.b16 %v808
        %v849 = vunpack.c.l.b16 %v809
        %v850 = vunpack.c.l.b16 %v810
        %v851 = vunpack.c.l.b16 %v811
        %v852 = vunpack.c.l.b16 %v812
        %v853 = vunpack.c.l.b16 %v813
        %v854 = vunpack.c.l.b16 %v814
        %v855 = vunpack.c.l.b16 %v815
        %v856 = vunpack.c.l.b16 %v816
        %v857 = vunpack.c.l.b16 %v817
        %v858 = vunpack.c.l.b16 %v818
        %v859 = vpack.c.b16 %v842, %v841
        %v860 = vpack.c.b16 %v844, %v843
        %v861 = vpack.c.b16 %v846, %v845
        %v862 = vpack.c.b16 %v848, %v847
        %v863 = vpack.c.b16 %v850, %v849
        %v864 = vpack.c.b16 %v852, %v851
        %v865 = vpack.c.b16 %v854, %v853
        %v866 = vpack.c.b16 %v856, %v855
        %v867 = vpack.c.b16 %v858, %v857
        %v877 = vsel %vm525, %v786, 0
        %v880 = vsel %vm525, %v788, 0
        %v883 = vsel %vm525, %v790, 0
        %v886 = vsel %vm525, %v792, 0
        %v889 = vsel %vm525, %v794, 0
        %v892 = vsel %vm525, %v796, 0
        %v895 = vsel %vm525, %v798, 0
        %v898 = vsel %vm525, %v800, 0
        %v901 = vsel %vm550, %v867, 0
        %903 = vmatpush.bf16.msra.mxu0 %v866
        %904 = vmatpush.bf16.msra.mxu0 %v865
        %905 = vmatpush.bf16.msra.mxu0 %v864
        %906 = vmatpush.bf16.msra.mxu0 %v863
        %907 = vmatpush.bf16.msra.mxu0 %v862
        %908 = vmatpush.bf16.msra.mxu0 %v861
        %909 = vmatpush.bf16.msra.mxu0 %v860
        %910 = vmatpush.bf16.msra.mxu0 %v859
        %911 = vmatmul.bf16.gmra.mxu0 %v785
        %v912 = vpop.f32.mrf.mxu0
        %v913 = vadd.f32 %v821, %v912
        %v914 = vpop.f32.mrf.mxu0
        %v915 = vadd.f32 %v821, %v914
        %916 = vmatmul.bf16.gmra.mxu0 %v787
        %v917 = vpop.f32.mrf.mxu0
        %v918 = vadd.f32 %v821, %v917
        %v919 = vpop.f32.mrf.mxu0
        %v920 = vadd.f32 %v821, %v919
        %921 = vmatmul.bf16.gmra.mxu0 %v789
        %v922 = vpop.f32.mrf.mxu0
        %v923 = vadd.f32 %v821, %v922
        %v924 = vpop.f32.mrf.mxu0
        %v925 = vadd.f32 %v821, %v924
        %926 = vmatmul.bf16.gmra.mxu0 %v791
        %v927 = vpop.f32.mrf.mxu0
        %v928 = vadd.f32 %v821, %v927
        %v929 = vpop.f32.mrf.mxu0
        %v930 = vadd.f32 %v821, %v929
        %931 = vmatmul.bf16.gmra.mxu0 %v793
        %v932 = vpop.f32.mrf.mxu0
        %v933 = vadd.f32 %v821, %v932
        %v934 = vpop.f32.mrf.mxu0
        %v935 = vadd.f32 %v821, %v934
        %936 = vmatmul.bf16.gmra.mxu0 %v795
        %v937 = vpop.f32.mrf.mxu0
        %v938 = vadd.f32 %v821, %v937
        %v939 = vpop.f32.mrf.mxu0
        %v940 = vadd.f32 %v821, %v939
        %941 = vmatmul.bf16.gmra.mxu0 %v797
        %v942 = vpop.f32.mrf.mxu0
        %v943 = vadd.f32 %v821, %v942
        %v944 = vpop.f32.mrf.mxu0
        %v945 = vadd.f32 %v821, %v944
        %946 = vmatmul.bf16.gmra.mxu0 %v799
        %v947 = vpop.f32.mrf.mxu0
        %v948 = vadd.f32 %v821, %v947
        %v949 = vpop.f32.mrf.mxu0
        %v950 = vadd.f32 %v821, %v949
        %951 = vdwg.mxu0
        %952 = vmatpush.bf16.msra.mxu0 0
        %953 = vmatpush.bf16.msra.mxu0 0
        %954 = vmatpush.bf16.msra.mxu0 0
        %955 = vmatpush.bf16.msra.mxu0 0
        %956 = vmatpush.bf16.msra.mxu0 0
        %957 = vmatpush.bf16.msra.mxu0 0
        %958 = vmatpush.bf16.msra.mxu0 0
        %959 = vmatpush.bf16.msra.mxu0 %v901
        %960 = vmatmul.bf16.gmra.mxu0 %v877
        %v961 = vpop.f32.mrf.mxu0
        %v962 = vadd.f32 %v913, %v961
        %v963 = vpop.f32.mrf.mxu0
        %v964 = vadd.f32 %v915, %v963
        %965 = vmatmul.bf16.gmra.mxu0 %v880
        %v966 = vpop.f32.mrf.mxu0
        %v967 = vadd.f32 %v918, %v966
        %v968 = vpop.f32.mrf.mxu0
        %v969 = vadd.f32 %v920, %v968
        %970 = vmatmul.bf16.gmra.mxu0 %v883
        %v971 = vpop.f32.mrf.mxu0
        %v972 = vadd.f32 %v923, %v971
        %v973 = vpop.f32.mrf.mxu0
        %v974 = vadd.f32 %v925, %v973
        %975 = vmatmul.bf16.gmra.mxu0 %v886
        %v976 = vpop.f32.mrf.mxu0
        %v977 = vadd.f32 %v928, %v976
        %v978 = vpop.f32.mrf.mxu0
        %v979 = vadd.f32 %v930, %v978
        %980 = vmatmul.bf16.gmra.mxu0 %v889
        %v981 = vpop.f32.mrf.mxu0
        %v982 = vadd.f32 %v933, %v981
        %v983 = vpop.f32.mrf.mxu0
        %v984 = vadd.f32 %v935, %v983
        %985 = vmatmul.bf16.gmra.mxu0 %v892
        %v986 = vpop.f32.mrf.mxu0
        %v987 = vadd.f32 %v938, %v986
        %v988 = vpop.f32.mrf.mxu0
        %v989 = vadd.f32 %v940, %v988
        %990 = vmatmul.bf16.gmra.mxu0 %v895
        %v991 = vpop.f32.mrf.mxu0
        %v992 = vadd.f32 %v943, %v991
        %v993 = vpop.f32.mrf.mxu0
        %v994 = vadd.f32 %v945, %v993
        %995 = vmatmul.bf16.gmra.mxu0 %v898
        %v996 = vpop.f32.mrf.mxu0
        %v997 = vadd.f32 %v948, %v996
        %v998 = vpop.f32.mrf.mxu0
        %v999 = vadd.f32 %v950, %v998
        %1000 = vdwg.mxu0
        %v1001 = vmax.f32 %v962, 0.0
        %v1002 = vmax.f32 %v964, 0.0
        %v1003 = vmax.f32 %v967, 0.0
        %v1004 = vmax.f32 %v969, 0.0
        %v1005 = vmax.f32 %v972, 0.0
        %v1006 = vmax.f32 %v974, 0.0
        %v1007 = vmax.f32 %v977, 0.0
        %v1008 = vmax.f32 %v979, 0.0
        %v1009 = vmax.f32 %v982, 0.0
        %v1010 = vmax.f32 %v984, 0.0
        %v1011 = vmax.f32 %v987, 0.0
        %v1012 = vmax.f32 %v989, 0.0
        %v1013 = vmax.f32 %v992, 0.0
        %v1014 = vmax.f32 %v994, 0.0
        %v1015 = vmax.f32 %v997, 0.0
        %v1016 = vmax.f32 %v999, 0.0
        %v1017 = vpack.c.bf16 %v1002, %v1001
        %v1018 = vpack.c.bf16 %v1004, %v1003
        %v1019 = vpack.c.bf16 %v1006, %v1005
        %v1020 = vpack.c.bf16 %v1008, %v1007
        %v1021 = vpack.c.bf16 %v1010, %v1009
        %v1022 = vpack.c.bf16 %v1012, %v1011
        %v1023 = vpack.c.bf16 %v1014, %v1013
        %v1024 = vpack.c.bf16 %v1016, %v1015
        %v1025 = vld [vmem:[%s5] sm:$0xf]
        %v1026 = vld [vmem:[%s5 + $0x4] sm:$0xf]
        %v1027 = vld [vmem:[%s5 + $0x8] sm:$0xf]
        %v1028 = vld [vmem:[%s5 + $0xc] sm:$0xf]
        %v1029 = vld [vmem:[%s5 + $0x10] sm:$0xf]
        %v1030 = vld [vmem:[%s5 + $0x14] sm:$0xf]
        %v1031 = vld [vmem:[%s5 + $0x18] sm:$0xf]
        %v1032 = vld [vmem:[%s5 + $0x1c] sm:$0xf]
        %v1033 = vld [vmem:[%s5 + $0x20] sm:$0xf]
        %v1034 = vld [vmem:[%s6] sm:$0x1]
        %v1036 = vperm.slane %v1034, 0
        %v1047 = vunpack.c.l.b16 %v1025
        %v1048 = vunpack.c.l.b16 %v1026
        %v1049 = vunpack.c.l.b16 %v1027
        %v1050 = vunpack.c.l.b16 %v1028
        %v1051 = vunpack.c.l.b16 %v1029
        %v1052 = vunpack.c.l.b16 %v1030
        %v1053 = vunpack.c.l.b16 %v1031
        %v1054 = vunpack.c.l.b16 %v1032
        %v1055 = vunpack.c.l.b16 %v1033
        %v1056 = vpack.c.b16 %v1048, %v1047
        %v1057 = vpack.c.b16 %v1050, %v1049
        %v1058 = vpack.c.b16 %v1052, %v1051
        %v1059 = vpack.c.b16 %v1054, %v1053
        %v1060 = vpack.c.b16 %v1055, %v1055
        %vm1065 = vcmask 580608
        %v1067 = vsel %vm1065, %v1017, 0
        %v1070 = vsel %vm1065, %v1018, 0
        %v1073 = vsel %vm1065, %v1019, 0
        %v1076 = vsel %vm1065, %v1020, 0
        %v1079 = vsel %vm1065, %v1021, 0
        %v1082 = vsel %vm1065, %v1022, 0
        %v1085 = vsel %vm1065, %v1023, 0
        %v1088 = vsel %vm1065, %v1024, 0
        %vm1090 = vcmask 1042432
        %vm1091 = vcmask 1043456
        %v1092 = vsel %vm1090, 4294967295, 65535
        %v1093 = vsel %vm1091, %v1092, 0
        %v1095 = vand.u32 %v1060, %v1093
        %1097 = vmatpush.bf16.msra.mxu0 0
        %1098 = vmatpush.bf16.msra.mxu0 0
        %1099 = vmatpush.bf16.msra.mxu0 0
        %1100 = vmatpush.bf16.msra.mxu0 %v1095
        %1101 = vmatpush.bf16.msra.mxu0 %v1059
        %1102 = vmatpush.bf16.msra.mxu0 %v1058
        %1103 = vmatpush.bf16.msra.mxu0 %v1057
        %1104 = vmatpush.bf16.msra.mxu0 %v1056
        %1105 = vmatmul.bf16.gmra.mxu0 %v1067
        %v1106 = vpop.f32.mrf.mxu0
        %v1107 = vadd.f32 %v1036, %v1106
        %v1108 = vpop.f32.mrf.mxu0
        %v1109 = vadd.f32 %v1036, %v1108
        %1110 = vmatmul.bf16.gmra.mxu0 %v1070
        %v1111 = vpop.f32.mrf.mxu0
        %v1112 = vadd.f32 %v1036, %v1111
        %v1113 = vpop.f32.mrf.mxu0
        %v1114 = vadd.f32 %v1036, %v1113
        %1115 = vmatmul.bf16.gmra.mxu0 %v1073
        %v1116 = vpop.f32.mrf.mxu0
        %v1117 = vadd.f32 %v1036, %v1116
        %v1118 = vpop.f32.mrf.mxu0
        %v1119 = vadd.f32 %v1036, %v1118
        %1120 = vmatmul.bf16.gmra.mxu0 %v1076
        %v1121 = vpop.f32.mrf.mxu0
        %v1122 = vadd.f32 %v1036, %v1121
        %v1123 = vpop.f32.mrf.mxu0
        %v1124 = vadd.f32 %v1036, %v1123
        %1125 = vmatmul.bf16.gmra.mxu0 %v1079
        %v1126 = vpop.f32.mrf.mxu0
        %v1127 = vadd.f32 %v1036, %v1126
        %v1128 = vpop.f32.mrf.mxu0
        %v1129 = vadd.f32 %v1036, %v1128
        %1130 = vmatmul.bf16.gmra.mxu0 %v1082
        %v1131 = vpop.f32.mrf.mxu0
        %v1132 = vadd.f32 %v1036, %v1131
        %v1133 = vpop.f32.mrf.mxu0
        %v1134 = vadd.f32 %v1036, %v1133
        %1135 = vmatmul.bf16.gmra.mxu0 %v1085
        %v1136 = vpop.f32.mrf.mxu0
        %v1137 = vadd.f32 %v1036, %v1136
        %v1138 = vpop.f32.mrf.mxu0
        %v1139 = vadd.f32 %v1036, %v1138
        %1140 = vmatmul.bf16.gmra.mxu0 %v1088
        %v1141 = vpop.f32.mrf.mxu0
        %v1142 = vadd.f32 %v1036, %v1141
        %v1143 = vpop.f32.mrf.mxu0
        %v1144 = vadd.f32 %v1036, %v1143
        %1145 = vdwg.mxu0
        %v1146 = vmax.f32 %v1107, 0.0
        %v1147 = vmax.f32 %v1109, 0.0
        %v1148 = vmax.f32 %v1112, 0.0
        %v1149 = vmax.f32 %v1114, 0.0
        %v1150 = vmax.f32 %v1117, 0.0
        %v1151 = vmax.f32 %v1119, 0.0
        %v1152 = vmax.f32 %v1122, 0.0
        %v1153 = vmax.f32 %v1124, 0.0
        %v1154 = vmax.f32 %v1127, 0.0
        %v1155 = vmax.f32 %v1129, 0.0
        %v1156 = vmax.f32 %v1132, 0.0
        %v1157 = vmax.f32 %v1134, 0.0
        %v1158 = vmax.f32 %v1137, 0.0
        %v1159 = vmax.f32 %v1139, 0.0
        %v1160 = vmax.f32 %v1142, 0.0
        %v1161 = vmax.f32 %v1144, 0.0
        %v1162 = vld [vmem:[%s7] sm:$0x1]
        %v1164 = vperm.slane %v1162, 0
        %v1166 = vmul.f32 %v1146, %v1164
        %v1167 = vmul.f32 %v1147, %v1164
        %v1168 = vmul.f32 %v1148, %v1164
        %v1169 = vmul.f32 %v1149, %v1164
        %v1170 = vmul.f32 %v1150, %v1164
        %v1171 = vmul.f32 %v1151, %v1164
        %v1172 = vmul.f32 %v1152, %v1164
        %v1173 = vmul.f32 %v1153, %v1164
        %v1174 = vmul.f32 %v1154, %v1164
        %v1175 = vmul.f32 %v1155, %v1164
        %v1176 = vmul.f32 %v1156, %v1164
        %v1177 = vmul.f32 %v1157, %v1164
        %v1178 = vmul.f32 %v1158, %v1164
        %v1179 = vmul.f32 %v1159, %v1164
        %v1180 = vmul.f32 %v1160, %v1164
        %v1181 = vmul.f32 %v1161, %v1164
        %v1182 = vsel %vm1065, %v1166, 0.0
        %1183 = vadd.xlane.f32.xlu0 %v1182
        %v1184 = vpop.xlane.xlu0 %1183
        %v1185 = vsel %vm1065, %v1167, 0.0
        %1186 = vadd.xlane.f32.xlu0 %v1185
        %v1187 = vpop.xlane.xlu0 %1186
        %v1188 = vsel %vm1065, %v1168, 0.0
        %1189 = vadd.xlane.f32.xlu0 %v1188
        %v1190 = vpop.xlane.xlu0 %1189
        %v1191 = vsel %vm1065, %v1169, 0.0
        %1192 = vadd.xlane.f32.xlu0 %v1191
        %v1193 = vpop.xlane.xlu0 %1192
        %v1194 = vsel %vm1065, %v1170, 0.0
        %1195 = vadd.xlane.f32.xlu0 %v1194
        %v1196 = vpop.xlane.xlu0 %1195
        %v1197 = vsel %vm1065, %v1171, 0.0
        %1198 = vadd.xlane.f32.xlu0 %v1197
        %v1199 = vpop.xlane.xlu0 %1198
        %v1200 = vsel %vm1065, %v1172, 0.0
        %1201 = vadd.xlane.f32.xlu0 %v1200
        %v1202 = vpop.xlane.xlu0 %1201
        %v1203 = vsel %vm1065, %v1173, 0.0
        %1204 = vadd.xlane.f32.xlu0 %v1203
        %v1205 = vpop.xlane.xlu0 %1204
        %v1206 = vsel %vm1065, %v1174, 0.0
        %1207 = vadd.xlane.f32.xlu0 %v1206
        %v1208 = vpop.xlane.xlu0 %1207
        %v1209 = vsel %vm1065, %v1175, 0.0
        %1210 = vadd.xlane.f32.xlu0 %v1209
        %v1211 = vpop.xlane.xlu0 %1210
        %v1212 = vsel %vm1065, %v1176, 0.0
        %1213 = vadd.xlane.f32.xlu0 %v1212
        %v1214 = vpop.xlane.xlu0 %1213
        %v1215 = vsel %vm1065, %v1177, 0.0
        %1216 = vadd.xlane.f32.xlu0 %v1215
        %v1217 = vpop.xlane.xlu0 %1216
        %v1218 = vsel %vm1065, %v1178, 0.0
        %1219 = vadd.xlane.f32.xlu0 %v1218
        %v1220 = vpop.xlane.xlu0 %1219
        %v1221 = vsel %vm1065, %v1179, 0.0
        %1222 = vadd.xlane.f32.xlu0 %v1221
        %v1223 = vpop.xlane.xlu0 %1222
        %v1224 = vsel %vm1065, %v1180, 0.0
        %1225 = vadd.xlane.f32.xlu0 %v1224
        %v1226 = vpop.xlane.xlu0 %1225
        %v1227 = vsel %vm1065, %v1181, 0.0
        %1228 = vadd.xlane.f32.xlu0 %v1227
        %v1229 = vpop.xlane.xlu0 %1228
        %v1230 = vld [vmem:[#allocation2] sm:$0x1]
        %v1232 = vperm.slane %v1230, 0
        %v1234 = vadd.f32 %v1184, %v1232
        %v1235 = vadd.f32 %v1187, %v1232
        %v1236 = vadd.f32 %v1190, %v1232
        %v1237 = vadd.f32 %v1193, %v1232
        %v1238 = vadd.f32 %v1196, %v1232
        %v1239 = vadd.f32 %v1199, %v1232
        %v1240 = vadd.f32 %v1202, %v1232
        %v1241 = vadd.f32 %v1205, %v1232
        %v1242 = vadd.f32 %v1208, %v1232
        %v1243 = vadd.f32 %v1211, %v1232
        %v1244 = vadd.f32 %v1214, %v1232
        %v1245 = vadd.f32 %v1217, %v1232
        %v1246 = vadd.f32 %v1220, %v1232
        %v1247 = vadd.f32 %v1223, %v1232
        %v1248 = vadd.f32 %v1226, %v1232
        %v1249 = vadd.f32 %v1229, %v1232
        %v1250 = vsub.f32 0.0, %v1234
        %v1251 = vsub.f32 0.0, %v1235
        %v1252 = vsub.f32 0.0, %v1236
        %v1253 = vsub.f32 0.0, %v1237
        %v1254 = vsub.f32 0.0, %v1238
        %v1255 = vsub.f32 0.0, %v1239
        %v1256 = vsub.f32 0.0, %v1240
        %v1257 = vsub.f32 0.0, %v1241
        %v1258 = vsub.f32 0.0, %v1242
        %v1259 = vsub.f32 0.0, %v1243
        %v1260 = vsub.f32 0.0, %v1244
        %v1261 = vsub.f32 0.0, %v1245
        %v1262 = vsub.f32 0.0, %v1246
        %v1263 = vsub.f32 0.0, %v1247
        %v1264 = vsub.f32 0.0, %v1248
        %v1265 = vsub.f32 0.0, %v1249
        %v1266 = vmul.f32 %v1250, 1.442695
        %v1267 = vpow.pop %v1266
        %v1268 = vmul.f32 %v1251, 1.442695
        %v1269 = vpow.pop %v1268
        %v1270 = vmul.f32 %v1252, 1.442695
        %v1271 = vpow.pop %v1270
        %v1272 = vmul.f32 %v1253, 1.442695
        %v1273 = vpow.pop %v1272
        %v1274 = vmul.f32 %v1254, 1.442695
        %v1275 = vpow.pop %v1274
        %v1276 = vmul.f32 %v1255, 1.442695
        %v1277 = vpow.pop %v1276
        %v1278 = vmul.f32 %v1256, 1.442695
        %v1279 = vpow.pop %v1278
        %v1280 = vmul.f32 %v1257, 1.442695
        %v1281 = vpow.pop %v1280
        %v1282 = vmul.f32 %v1258, 1.442695
        %v1283 = vpow.pop %v1282
        %v1284 = vmul.f32 %v1259, 1.442695
        %v1285 = vpow.pop %v1284
        %v1286 = vmul.f32 %v1260, 1.442695
        %v1287 = vpow.pop %v1286
        %v1288 = vmul.f32 %v1261, 1.442695
        %v1289 = vpow.pop %v1288
        %v1290 = vmul.f32 %v1262, 1.442695
        %v1291 = vpow.pop %v1290
        %v1292 = vmul.f32 %v1263, 1.442695
        %v1293 = vpow.pop %v1292
        %v1294 = vmul.f32 %v1264, 1.442695
        %v1295 = vpow.pop %v1294
        %v1296 = vmul.f32 %v1265, 1.442695
        %v1297 = vpow.pop %v1296
        %v1298 = vadd.f32 %v1267, 1.0
        %v1299 = vadd.f32 %v1269, 1.0
        %v1300 = vadd.f32 %v1271, 1.0
        %v1301 = vadd.f32 %v1273, 1.0
        %v1302 = vadd.f32 %v1275, 1.0
        %v1303 = vadd.f32 %v1277, 1.0
        %v1304 = vadd.f32 %v1279, 1.0
        %v1305 = vadd.f32 %v1281, 1.0
        %v1306 = vadd.f32 %v1283, 1.0
        %v1307 = vadd.f32 %v1285, 1.0
        %v1308 = vadd.f32 %v1287, 1.0
        %v1309 = vadd.f32 %v1289, 1.0
        %v1310 = vadd.f32 %v1291, 1.0
        %v1311 = vadd.f32 %v1293, 1.0
        %v1312 = vadd.f32 %v1295, 1.0
        %v1313 = vadd.f32 %v1297, 1.0
        %v1314 = vrcp.pop %v1298
        %v1315 = vmul.f32 %v1298, %v1314
        %v1316 = vsub.f32 1.0, %v1315
        %v1317 = vmul.f32 %v1314, %v1316
        %v1318 = vadd.f32 %v1314, %v1317
        %vm1319 = vweird.f32 %v1298
        %vm1320 = vweird.f32 %v1314
        %vm1321 = vmor %vm1319, %vm1320
        %v1322 = vsel %vm1321, %v1314, %v1318
        %v1323 = vand.u32 2147483647, %v1298
        %vm1324 = vcmp.eq.f32.partialorder %v1323, 8.507059e+37
        %v1325 = vand.u32 %v1298, 2147483648
        %v1326 = vor.u32 1.1754944e-38, %v1325
        %v1327 = vsel %vm1324, %v1326, %v1322
        %v1328 = vmul.f32 1.0, %v1327
        %v1329 = vrcp.pop %v1299
        %v1330 = vmul.f32 %v1299, %v1329
        %v1331 = vsub.f32 1.0, %v1330
        %v1332 = vmul.f32 %v1329, %v1331
        %v1333 = vadd.f32 %v1329, %v1332
        %vm1334 = vweird.f32 %v1299
        %vm1335 = vweird.f32 %v1329
        %vm1336 = vmor %vm1334, %vm1335
        %v1337 = vsel %vm1336, %v1329, %v1333
        %v1338 = vand.u32 2147483647, %v1299
        %vm1339 = vcmp.eq.f32.partialorder %v1338, 8.507059e+37
        %v1340 = vand.u32 %v1299, 2147483648
        %v1341 = vor.u32 1.1754944e-38, %v1340
        %v1342 = vsel %vm1339, %v1341, %v1337
        %v1343 = vmul.f32 1.0, %v1342
        %v1344 = vrcp.pop %v1300
        %v1345 = vmul.f32 %v1300, %v1344
        %v1346 = vsub.f32 1.0, %v1345
        %v1347 = vmul.f32 %v1344, %v1346
        %v1348 = vadd.f32 %v1344, %v1347
        %vm1349 = vweird.f32 %v1300
        %vm1350 = vweird.f32 %v1344
        %vm1351 = vmor %vm1349, %vm1350
        %v1352 = vsel %vm1351, %v1344, %v1348
        %v1353 = vand.u32 2147483647, %v1300
        %vm1354 = vcmp.eq.f32.partialorder %v1353, 8.507059e+37
        %v1355 = vand.u32 %v1300, 2147483648
        %v1356 = vor.u32 1.1754944e-38, %v1355
        %v1357 = vsel %vm1354, %v1356, %v1352
        %v1358 = vmul.f32 1.0, %v1357
        %v1359 = vrcp.pop %v1301
        %v1360 = vmul.f32 %v1301, %v1359
        %v1361 = vsub.f32 1.0, %v1360
        %v1362 = vmul.f32 %v1359, %v1361
        %v1363 = vadd.f32 %v1359, %v1362
        %vm1364 = vweird.f32 %v1301
        %vm1365 = vweird.f32 %v1359
        %vm1366 = vmor %vm1364, %vm1365
        %v1367 = vsel %vm1366, %v1359, %v1363
        %v1368 = vand.u32 2147483647, %v1301
        %vm1369 = vcmp.eq.f32.partialorder %v1368, 8.507059e+37
        %v1370 = vand.u32 %v1301, 2147483648
        %v1371 = vor.u32 1.1754944e-38, %v1370
        %v1372 = vsel %vm1369, %v1371, %v1367
        %v1373 = vmul.f32 1.0, %v1372
        %v1374 = vrcp.pop %v1302
        %v1375 = vmul.f32 %v1302, %v1374
        %v1376 = vsub.f32 1.0, %v1375
        %v1377 = vmul.f32 %v1374, %v1376
        %v1378 = vadd.f32 %v1374, %v1377
        %vm1379 = vweird.f32 %v1302
        %vm1380 = vweird.f32 %v1374
        %vm1381 = vmor %vm1379, %vm1380
        %v1382 = vsel %vm1381, %v1374, %v1378
        %v1383 = vand.u32 2147483647, %v1302
        %vm1384 = vcmp.eq.f32.partialorder %v1383, 8.507059e+37
        %v1385 = vand.u32 %v1302, 2147483648
        %v1386 = vor.u32 1.1754944e-38, %v1385
        %v1387 = vsel %vm1384, %v1386, %v1382
        %v1388 = vmul.f32 1.0, %v1387
        %v1389 = vrcp.pop %v1303
        %v1390 = vmul.f32 %v1303, %v1389
        %v1391 = vsub.f32 1.0, %v1390
        %v1392 = vmul.f32 %v1389, %v1391
        %v1393 = vadd.f32 %v1389, %v1392
        %vm1394 = vweird.f32 %v1303
        %vm1395 = vweird.f32 %v1389
        %vm1396 = vmor %vm1394, %vm1395
        %v1397 = vsel %vm1396, %v1389, %v1393
        %v1398 = vand.u32 2147483647, %v1303
        %vm1399 = vcmp.eq.f32.partialorder %v1398, 8.507059e+37
        %v1400 = vand.u32 %v1303, 2147483648
        %v1401 = vor.u32 1.1754944e-38, %v1400
        %v1402 = vsel %vm1399, %v1401, %v1397
        %v1403 = vmul.f32 1.0, %v1402
        %v1404 = vrcp.pop %v1304
        %v1405 = vmul.f32 %v1304, %v1404
        %v1406 = vsub.f32 1.0, %v1405
        %v1407 = vmul.f32 %v1404, %v1406
        %v1408 = vadd.f32 %v1404, %v1407
        %vm1409 = vweird.f32 %v1304
        %vm1410 = vweird.f32 %v1404
        %vm1411 = vmor %vm1409, %vm1410
        %v1412 = vsel %vm1411, %v1404, %v1408
        %v1413 = vand.u32 2147483647, %v1304
        %vm1414 = vcmp.eq.f32.partialorder %v1413, 8.507059e+37
        %v1415 = vand.u32 %v1304, 2147483648
        %v1416 = vor.u32 1.1754944e-38, %v1415
        %v1417 = vsel %vm1414, %v1416, %v1412
        %v1418 = vmul.f32 1.0, %v1417
        %v1419 = vrcp.pop %v1305
        %v1420 = vmul.f32 %v1305, %v1419
        %v1421 = vsub.f32 1.0, %v1420
        %v1422 = vmul.f32 %v1419, %v1421
        %v1423 = vadd.f32 %v1419, %v1422
        %vm1424 = vweird.f32 %v1305
        %vm1425 = vweird.f32 %v1419
        %vm1426 = vmor %vm1424, %vm1425
        %v1427 = vsel %vm1426, %v1419, %v1423
        %v1428 = vand.u32 2147483647, %v1305
        %vm1429 = vcmp.eq.f32.partialorder %v1428, 8.507059e+37
        %v1430 = vand.u32 %v1305, 2147483648
        %v1431 = vor.u32 1.1754944e-38, %v1430
        %v1432 = vsel %vm1429, %v1431, %v1427
        %v1433 = vmul.f32 1.0, %v1432
        %v1434 = vrcp.pop %v1306
        %v1435 = vmul.f32 %v1306, %v1434
        %v1436 = vsub.f32 1.0, %v1435
        %v1437 = vmul.f32 %v1434, %v1436
        %v1438 = vadd.f32 %v1434, %v1437
        %vm1439 = vweird.f32 %v1306
        %vm1440 = vweird.f32 %v1434
        %vm1441 = vmor %vm1439, %vm1440
        %v1442 = vsel %vm1441, %v1434, %v1438
        %v1443 = vand.u32 2147483647, %v1306
        %vm1444 = vcmp.eq.f32.partialorder %v1443, 8.507059e+37
        %v1445 = vand.u32 %v1306, 2147483648
        %v1446 = vor.u32 1.1754944e-38, %v1445
        %v1447 = vsel %vm1444, %v1446, %v1442
        %v1448 = vmul.f32 1.0, %v1447
        %v1449 = vrcp.pop %v1307
        %v1450 = vmul.f32 %v1307, %v1449
        %v1451 = vsub.f32 1.0, %v1450
        %v1452 = vmul.f32 %v1449, %v1451
        %v1453 = vadd.f32 %v1449, %v1452
        %vm1454 = vweird.f32 %v1307
        %vm1455 = vweird.f32 %v1449
        %vm1456 = vmor %vm1454, %vm1455
        %v1457 = vsel %vm1456, %v1449, %v1453
        %v1458 = vand.u32 2147483647, %v1307
        %vm1459 = vcmp.eq.f32.partialorder %v1458, 8.507059e+37
        %v1460 = vand.u32 %v1307, 2147483648
        %v1461 = vor.u32 1.1754944e-38, %v1460
        %v1462 = vsel %vm1459, %v1461, %v1457
        %v1463 = vmul.f32 1.0, %v1462
        %v1464 = vrcp.pop %v1308
        %v1465 = vmul.f32 %v1308, %v1464
        %v1466 = vsub.f32 1.0, %v1465
        %v1467 = vmul.f32 %v1464, %v1466
        %v1468 = vadd.f32 %v1464, %v1467
        %vm1469 = vweird.f32 %v1308
        %vm1470 = vweird.f32 %v1464
        %vm1471 = vmor %vm1469, %vm1470
        %v1472 = vsel %vm1471, %v1464, %v1468
        %v1473 = vand.u32 2147483647, %v1308
        %vm1474 = vcmp.eq.f32.partialorder %v1473, 8.507059e+37
        %v1475 = vand.u32 %v1308, 2147483648
        %v1476 = vor.u32 1.1754944e-38, %v1475
        %v1477 = vsel %vm1474, %v1476, %v1472
        %v1478 = vmul.f32 1.0, %v1477
        %v1479 = vrcp.pop %v1309
        %v1480 = vmul.f32 %v1309, %v1479
        %v1481 = vsub.f32 1.0, %v1480
        %v1482 = vmul.f32 %v1479, %v1481
        %v1483 = vadd.f32 %v1479, %v1482
        %vm1484 = vweird.f32 %v1309
        %vm1485 = vweird.f32 %v1479
        %vm1486 = vmor %vm1484, %vm1485
        %v1487 = vsel %vm1486, %v1479, %v1483
        %v1488 = vand.u32 2147483647, %v1309
        %vm1489 = vcmp.eq.f32.partialorder %v1488, 8.507059e+37
        %v1490 = vand.u32 %v1309, 2147483648
        %v1491 = vor.u32 1.1754944e-38, %v1490
        %v1492 = vsel %vm1489, %v1491, %v1487
        %v1493 = vmul.f32 1.0, %v1492
        %v1494 = vrcp.pop %v1310
        %v1495 = vmul.f32 %v1310, %v1494
        %v1496 = vsub.f32 1.0, %v1495
        %v1497 = vmul.f32 %v1494, %v1496
        %v1498 = vadd.f32 %v1494, %v1497
        %vm1499 = vweird.f32 %v1310
        %vm1500 = vweird.f32 %v1494
        %vm1501 = vmor %vm1499, %vm1500
        %v1502 = vsel %vm1501, %v1494, %v1498
        %v1503 = vand.u32 2147483647, %v1310
        %vm1504 = vcmp.eq.f32.partialorder %v1503, 8.507059e+37
        %v1505 = vand.u32 %v1310, 2147483648
        %v1506 = vor.u32 1.1754944e-38, %v1505
        %v1507 = vsel %vm1504, %v1506, %v1502
        %v1508 = vmul.f32 1.0, %v1507
        %v1509 = vrcp.pop %v1311
        %v1510 = vmul.f32 %v1311, %v1509
        %v1511 = vsub.f32 1.0, %v1510
        %v1512 = vmul.f32 %v1509, %v1511
        %v1513 = vadd.f32 %v1509, %v1512
        %vm1514 = vweird.f32 %v1311
        %vm1515 = vweird.f32 %v1509
        %vm1516 = vmor %vm1514, %vm1515
        %v1517 = vsel %vm1516, %v1509, %v1513
        %v1518 = vand.u32 2147483647, %v1311
        %vm1519 = vcmp.eq.f32.partialorder %v1518, 8.507059e+37
        %v1520 = vand.u32 %v1311, 2147483648
        %v1521 = vor.u32 1.1754944e-38, %v1520
        %v1522 = vsel %vm1519, %v1521, %v1517
        %v1523 = vmul.f32 1.0, %v1522
        %v1524 = vrcp.pop %v1312
        %v1525 = vmul.f32 %v1312, %v1524
        %v1526 = vsub.f32 1.0, %v1525
        %v1527 = vmul.f32 %v1524, %v1526
        %v1528 = vadd.f32 %v1524, %v1527
        %vm1529 = vweird.f32 %v1312
        %vm1530 = vweird.f32 %v1524
        %vm1531 = vmor %vm1529, %vm1530
        %v1532 = vsel %vm1531, %v1524, %v1528
        %v1533 = vand.u32 2147483647, %v1312
        %vm1534 = vcmp.eq.f32.partialorder %v1533, 8.507059e+37
        %v1535 = vand.u32 %v1312, 2147483648
        %v1536 = vor.u32 1.1754944e-38, %v1535
        %v1537 = vsel %vm1534, %v1536, %v1532
        %v1538 = vmul.f32 1.0, %v1537
        %v1539 = vrcp.pop %v1313
        %v1540 = vmul.f32 %v1313, %v1539
        %v1541 = vsub.f32 1.0, %v1540
        %v1542 = vmul.f32 %v1539, %v1541
        %v1543 = vadd.f32 %v1539, %v1542
        %vm1544 = vweird.f32 %v1313
        %vm1545 = vweird.f32 %v1539
        %vm1546 = vmor %vm1544, %vm1545
        %v1547 = vsel %vm1546, %v1539, %v1543
        %v1548 = vand.u32 2147483647, %v1313
        %vm1549 = vcmp.eq.f32.partialorder %v1548, 8.507059e+37
        %v1550 = vand.u32 %v1313, 2147483648
        %v1551 = vor.u32 1.1754944e-38, %v1550
        %v1552 = vsel %vm1549, %v1551, %v1547
        %v1553 = vmul.f32 1.0, %v1552
        %vm1554 = vcmask 7168
        %1555 = vst.msk [vmem:[%s341] sm:$0xff] %vm1554, %v1328
        %1556 = vst.msk [vmem:[%s341 + $0x8] sm:$0xff] %vm1554, %v1343
        %1557 = vst.msk [vmem:[%s341 + $0x10] sm:$0xff] %vm1554, %v1358
        %1558 = vst.msk [vmem:[%s341 + $0x18] sm:$0xff] %vm1554, %v1373
        %1559 = vst.msk [vmem:[%s341 + $0x20] sm:$0xff] %vm1554, %v1388
        %1560 = vst.msk [vmem:[%s341 + $0x28] sm:$0xff] %vm1554, %v1403
        %1561 = vst.msk [vmem:[%s341 + $0x30] sm:$0xff] %vm1554, %v1418
        %1562 = vst.msk [vmem:[%s341 + $0x38] sm:$0xff] %vm1554, %v1433
        %1563 = vst.msk [vmem:[%s341 + $0x40] sm:$0xff] %vm1554, %v1448
        %1564 = vst.msk [vmem:[%s341 + $0x48] sm:$0xff] %vm1554, %v1463
        %1565 = vst.msk [vmem:[%s341 + $0x50] sm:$0xff] %vm1554, %v1478
        %1566 = vst.msk [vmem:[%s341 + $0x58] sm:$0xff] %vm1554, %v1493
        %1567 = vst.msk [vmem:[%s341 + $0x60] sm:$0xff] %vm1554, %v1508
        %1568 = vst.msk [vmem:[%s341 + $0x68] sm:$0xff] %vm1554, %v1523
        %1569 = vst.msk [vmem:[%s341 + $0x70] sm:$0xff] %vm1554, %v1538
        %1570 = vst.msk [vmem:[%s341 + $0x78] sm:$0xff] %vm1554, %v1553
        %s1571 = sand.u32 %s224, 1
        %s1572 = sand.u32 %s224, 1
        %s1573 = smul.addr %s1572, 128
        %s1574 = scalar_lea.vmem [#allocation3], %s1573
        // Predicated region
        $region57: #{deep_forward.1} parent=55 // pred_check
          %p1575 = pneg %p234
        $region58: #{deep_forward.1} parent=55 // pred_check_branch
          %1577 = sbr.rel (%p1575) target = $region60
        $region59: #{deep_forward.1} parent=55 // pred_region
          %s1578 = smul.u32 16, %s22
          %s1579 = ssub.s32 38, %s1578
          %p1580 = scmp.lt.s32.totalorder %s1579, 16
          %s1581 = scalar_select %p1580, %s1579, 16
          %s1582 = smul.u32 8, %s1581
          %p1583 = scmp.ne.s32.totalorder 0, %s1582
          %s1584 = smul.addr %s1578, 8
          %s1585 = scalar_lea.vmem %s9, %s1584
          // Predicated region
          $region61: #{deep_forward.1} parent=59 // pred_check
            %p1586 = pneg %p1583
          $region62: #{deep_forward.1} parent=59 // pred_check_branch
            %1588 = sbr.rel (%p1586) target = $region64
          $region63: #{deep_forward.1} parent=59 // pred_region
            // Predicated region
            $region65: #{deep_forward.1} parent=63 // pred_check
              _
            $region66: #{deep_forward.1} parent=63 // pred_check_branch
              %1590 = sbr.rel (0) target = $region68
            $region67: #{deep_forward.1} parent=63 // pred_region
              // Predicated region
              $region87: #{deep_forward.1} parent=67 // pred_check
                _
              $region88: #{deep_forward.1} parent=67 // pred_check_branch
                %1670 = sbr.rel (0) target = $region90
              $region89: #{deep_forward.1} parent=67 // pred_region
                %s1671 = sshrl.u32 %s1581, 4
                // While loop
                $region91: #{deep_forward.1} parent=89 // loop_pre_header
                  _
                $region92: #{deep_forward.1} parent=89 // loop_header
                  %s1673 = sphi 0, %s1675
                  %p1674 = scmp.ge.s32.totalorder %s1673, %s1671
                  %s1678 = sphi 0, %s1715
                  %s1679 = sphi %s1574, %s1718
                  %s1680 = sphi %s1585, %s1719
                $region93: #{deep_forward.1} parent=89 // loop_header_branch
                  %1677 = sbr.rel (%p1674) target = $region97
                $region94: #{deep_forward.1} parent=89 // loop_body
                  %v1681 = vld [vmem:[%s1679] sm:$0xff]
                  %1682 = vst [vmem:[%s1680] sm:$0xff] %v1681
                  %v1683 = vld [vmem:[%s1679 + $0x8] sm:$0xff]
                  %1684 = vst [vmem:[%s1680 + $0x8] sm:$0xff] %v1683
                  %v1685 = vld [vmem:[%s1679 + $0x10] sm:$0xff]
                  %1686 = vst [vmem:[%s1680 + $0x10] sm:$0xff] %v1685
                  %v1687 = vld [vmem:[%s1679 + $0x18] sm:$0xff]
                  %1688 = vst [vmem:[%s1680 + $0x18] sm:$0xff] %v1687
                  %v1689 = vld [vmem:[%s1679 + $0x20] sm:$0xff]
                  %1690 = vst [vmem:[%s1680 + $0x20] sm:$0xff] %v1689
                  %v1691 = vld [vmem:[%s1679 + $0x28] sm:$0xff]
                  %1692 = vst [vmem:[%s1680 + $0x28] sm:$0xff] %v1691
                  %v1693 = vld [vmem:[%s1679 + $0x30] sm:$0xff]
                  %1694 = vst [vmem:[%s1680 + $0x30] sm:$0xff] %v1693
                  %v1695 = vld [vmem:[%s1679 + $0x38] sm:$0xff]
                  %1696 = vst [vmem:[%s1680 + $0x38] sm:$0xff] %v1695
                  %v1697 = vld [vmem:[%s1679 + $0x40] sm:$0xff]
                  %1698 = vst [vmem:[%s1680 + $0x40] sm:$0xff] %v1697
                  %v1699 = vld [vmem:[%s1679 + $0x48] sm:$0xff]
                  %1700 = vst [vmem:[%s1680 + $0x48] sm:$0xff] %v1699
                  %v1701 = vld [vmem:[%s1679 + $0x50] sm:$0xff]
                  %1702 = vst [vmem:[%s1680 + $0x50] sm:$0xff] %v1701
                  %v1703 = vld [vmem:[%s1679 + $0x58] sm:$0xff]
                  %1704 = vst [vmem:[%s1680 + $0x58] sm:$0xff] %v1703
                  %v1705 = vld [vmem:[%s1679 + $0x60] sm:$0xff]
                  %1706 = vst [vmem:[%s1680 + $0x60] sm:$0xff] %v1705
                  %v1707 = vld [vmem:[%s1679 + $0x68] sm:$0xff]
                  %1708 = vst [vmem:[%s1680 + $0x68] sm:$0xff] %v1707
                  %v1709 = vld [vmem:[%s1679 + $0x70] sm:$0xff]
                  %1710 = vst [vmem:[%s1680 + $0x70] sm:$0xff] %v1709
                  %v1711 = vld [vmem:[%s1679 + $0x78] sm:$0xff]
                  %1712 = vst [vmem:[%s1680 + $0x78] sm:$0xff] %v1711
                  %s1713 = sadd.s32 1, %s1678
                  %p1714 = scmp.ge.s32.totalorder %s1713, %s1671
                  %s1715 = scalar_select %p1714, 0, %s1713
                  %s1716 = smul.u32 %s1715, 128
                  %s1717 = smul.u32 %s1715, 128
                  %s1718 = scalar_lea.vmem %s1574, %s1716 [#allocation3]
                  %s1719 = scalar_lea.vmem %s1585, %s1717
                $region95: #{deep_forward.1} parent=89 // loop_footer
                  %s1675 = sadd.s32 %s1673, 1
                $region96: #{deep_forward.1} parent=89 // loop_footer_branch
                  %1672 = sbr.rel target = $region92
                $region97: #{deep_forward.1} parent=89 // loop_exit
                  _
                %s1720 = sshrl.u32 %s1581, 4
                %s1721 = sand.u32 %s1581, 15
                %s1722 = smul.u32 %s1720, 16
                %s1723 = smul.u32 8, %s1722
                %s1724 = scalar_lea.vmem %s1574, %s1723 [#allocation3]
                %s1725 = smul.u32 8, %s1722
                %s1726 = scalar_lea.vmem %s1585, %s1725
                // While loop
                $region98: #{deep_forward.1} parent=89 // loop_pre_header
                  _
                $region99: #{deep_forward.1} parent=89 // loop_header
                  %s1728 = sphi 0, %s1730
                  %p1729 = scmp.ge.s32.totalorder %s1728, %s1721
                  %s1733 = sphi 0, %s1740
                  %s1734 = sphi %s1724, %s1743
                  %s1735 = sphi %s1726, %s1744
                $region100: #{deep_forward.1} parent=89 // loop_header_branch
                  %1732 = sbr.rel (%p1729) target = $region104
                $region101: #{deep_forward.1} parent=89 // loop_body
                  %v1736 = vld [vmem:[%s1734] sm:$0xff]
                  %1737 = vst [vmem:[%s1735] sm:$0xff] %v1736
                  %s1738 = sadd.s32 1, %s1733
                  %p1739 = scmp.ge.s32.totalorder %s1738, %s1721
                  %s1740 = scalar_select %p1739, 0, %s1738
                  %s1741 = smul.u32 %s1740, 8
                  %s1742 = smul.u32 %s1740, 8
                  %s1743 = scalar_lea.vmem %s1724, %s1741 [#allocation3]
                  %s1744 = scalar_lea.vmem %s1726, %s1742
                $region102: #{deep_forward.1} parent=89 // loop_footer
                  %s1730 = sadd.s32 %s1728, 1
                $region103: #{deep_forward.1} parent=89 // loop_footer_branch
                  %1727 = sbr.rel target = $region99
                $region104: #{deep_forward.1} parent=89 // loop_exit
                  _
              $region90: #{deep_forward.1} parent=67 // pred_fallthru
                _
              // Predicated region
              $region105: #{deep_forward.1} parent=67 // pred_check
                _
              $region106: #{deep_forward.1} parent=67 // pred_check_branch
                %1746 = sbr.rel target = $region108
              $region107: #{deep_forward.1} parent=67 // pred_region
                _
              $region108: #{deep_forward.1} parent=67 // pred_fallthru
                _
            $region68: #{deep_forward.1} parent=63 // pred_fallthru
              _
            // Predicated region
            $region69: #{deep_forward.1} parent=63 // pred_check
              _
            $region70: #{deep_forward.1} parent=63 // pred_check_branch
              %1592 = sbr.rel target = $region72
            $region71: #{deep_forward.1} parent=63 // pred_region
              %s1594 = ssub.s32 256, 1
              %s1595 = sshrl.u32 %s1581, 4
              // While loop
              $region73: #{deep_forward.1} parent=71 // loop_pre_header
                _
              $region74: #{deep_forward.1} parent=71 // loop_header
                %s1597 = sphi 0, %s1599
                %p1598 = scmp.ge.s32.totalorder %s1597, %s1595
                %s1602 = sphi 0, %s1639
                %s1603 = sphi %s1574, %s1642
                %s1604 = sphi %s1585, %s1643
              $region75: #{deep_forward.1} parent=71 // loop_header_branch
                %1601 = sbr.rel (%p1598) target = $region79
              $region76: #{deep_forward.1} parent=71 // loop_body
                %v1605 = vld [vmem:[%s1603] sm:%s1594]
                %1606 = vst [vmem:[%s1604] sm:%s1594] %v1605
                %v1607 = vld [vmem:[%s1603 + $0x8] sm:%s1594]
                %1608 = vst [vmem:[%s1604 + $0x8] sm:%s1594] %v1607
                %v1609 = vld [vmem:[%s1603 + $0x10] sm:%s1594]
                %1610 = vst [vmem:[%s1604 + $0x10] sm:%s1594] %v1609
                %v1611 = vld [vmem:[%s1603 + $0x18] sm:%s1594]
                %1612 = vst [vmem:[%s1604 + $0x18] sm:%s1594] %v1611
                %v1613 = vld [vmem:[%s1603 + $0x20] sm:%s1594]
                %1614 = vst [vmem:[%s1604 + $0x20] sm:%s1594] %v1613
                %v1615 = vld [vmem:[%s1603 + $0x28] sm:%s1594]
                %1616 = vst [vmem:[%s1604 + $0x28] sm:%s1594] %v1615
                %v1617 = vld [vmem:[%s1603 + $0x30] sm:%s1594]
                %1618 = vst [vmem:[%s1604 + $0x30] sm:%s1594] %v1617
                %v1619 = vld [vmem:[%s1603 + $0x38] sm:%s1594]
                %1620 = vst [vmem:[%s1604 + $0x38] sm:%s1594] %v1619
                %v1621 = vld [vmem:[%s1603 + $0x40] sm:%s1594]
                %1622 = vst [vmem:[%s1604 + $0x40] sm:%s1594] %v1621
                %v1623 = vld [vmem:[%s1603 + $0x48] sm:%s1594]
                %1624 = vst [vmem:[%s1604 + $0x48] sm:%s1594] %v1623
                %v1625 = vld [vmem:[%s1603 + $0x50] sm:%s1594]
                %1626 = vst [vmem:[%s1604 + $0x50] sm:%s1594] %v1625
                %v1627 = vld [vmem:[%s1603 + $0x58] sm:%s1594]
                %1628 = vst [vmem:[%s1604 + $0x58] sm:%s1594] %v1627
                %v1629 = vld [vmem:[%s1603 + $0x60] sm:%s1594]
                %1630 = vst [vmem:[%s1604 + $0x60] sm:%s1594] %v1629
                %v1631 = vld [vmem:[%s1603 + $0x68] sm:%s1594]
                %1632 = vst [vmem:[%s1604 + $0x68] sm:%s1594] %v1631
                %v1633 = vld [vmem:[%s1603 + $0x70] sm:%s1594]
                %1634 = vst [vmem:[%s1604 + $0x70] sm:%s1594] %v1633
                %v1635 = vld [vmem:[%s1603 + $0x78] sm:%s1594]
                %1636 = vst [vmem:[%s1604 + $0x78] sm:%s1594] %v1635
                %s1637 = sadd.s32 1, %s1602
                %p1638 = scmp.ge.s32.totalorder %s1637, %s1595
                %s1639 = scalar_select %p1638, 0, %s1637
                %s1640 = smul.u32 %s1639, 128
                %s1641 = smul.u32 %s1639, 128
                %s1642 = scalar_lea.vmem %s1574, %s1640 [#allocation3]
                %s1643 = scalar_lea.vmem %s1585, %s1641
              $region77: #{deep_forward.1} parent=71 // loop_footer
                %s1599 = sadd.s32 %s1597, 1
              $region78: #{deep_forward.1} parent=71 // loop_footer_branch
                %1596 = sbr.rel target = $region74
              $region79: #{deep_forward.1} parent=71 // loop_exit
                _
              %s1644 = sshrl.u32 %s1581, 4
              %s1645 = sand.u32 %s1581, 15
              %s1646 = smul.u32 %s1644, 16
              %s1647 = smul.u32 8, %s1646
              %s1648 = scalar_lea.vmem %s1574, %s1647 [#allocation3]
              %s1649 = smul.u32 8, %s1646
              %s1650 = scalar_lea.vmem %s1585, %s1649
              // While loop
              $region80: #{deep_forward.1} parent=71 // loop_pre_header
                _
              $region81: #{deep_forward.1} parent=71 // loop_header
                %s1652 = sphi 0, %s1654
                %p1653 = scmp.ge.s32.totalorder %s1652, %s1645
                %s1657 = sphi 0, %s1664
                %s1658 = sphi %s1648, %s1667
                %s1659 = sphi %s1650, %s1668
              $region82: #{deep_forward.1} parent=71 // loop_header_branch
                %1656 = sbr.rel (%p1653) target = $region86
              $region83: #{deep_forward.1} parent=71 // loop_body
                %v1660 = vld [vmem:[%s1658] sm:%s1594]
                %1661 = vst [vmem:[%s1659] sm:%s1594] %v1660
                %s1662 = sadd.s32 1, %s1657
                %p1663 = scmp.ge.s32.totalorder %s1662, %s1645
                %s1664 = scalar_select %p1663, 0, %s1662
                %s1665 = smul.u32 %s1664, 8
                %s1666 = smul.u32 %s1664, 8
                %s1667 = scalar_lea.vmem %s1648, %s1665 [#allocation3]
                %s1668 = scalar_lea.vmem %s1650, %s1666
              $region84: #{deep_forward.1} parent=71 // loop_footer
                %s1654 = sadd.s32 %s1652, 1
              $region85: #{deep_forward.1} parent=71 // loop_footer_branch
                %1651 = sbr.rel target = $region81
              $region86: #{deep_forward.1} parent=71 // loop_exit
                _
            $region72: #{deep_forward.1} parent=63 // pred_fallthru
              _
          $region64: #{deep_forward.1} parent=59 // pred_fallthru
            _
          %1747 = vnop
        $region60: #{deep_forward.1} parent=55 // pred_fallthru
          _
      $region56: #{deep_forward.1} parent=5 // pred_fallthru
        _
      %p1748 = scmp.le.s32.totalorder 2, %s17
      // Predicated region
      $region109: #{deep_forward.1} parent=5 // pred_check
        %p1749 = pneg %p1748
      $region110: #{deep_forward.1} parent=5 // pred_check_branch
        %1751 = sbr.rel (%p1749) target = $region112
      $region111: #{deep_forward.1} parent=5 // pred_region
        %s1752 = ssub.s32 %s17, 2
        // Predicated region
        $region113: #{deep_forward.1} parent=111 // pred_check
          %p1753 = pneg %p240
        $region114: #{deep_forward.1} parent=111 // pred_check_branch
          %1755 = sbr.rel (%p1753) target = $region116
        $region115: #{deep_forward.1} parent=111 // pred_region
          %s1756 = sand.u32 %s225, 1
          %s1757 = sand.u32 %s225, 1
          %s1758 = smul.addr %s1757, 128
          %s1759 = scalar_lea.vmem [#allocation3], %s1758
        $region116: #{deep_forward.1} parent=111 // pred_fallthru
          _
      $region112: #{deep_forward.1} parent=5 // pred_fallthru
        _
    $region6: #{deep_forward.1} parent=1 // loop_footer
      %s21 = sadd.s32 1, %s17
    $region7: #{deep_forward.1} parent=1 // loop_footer_branch
      %16 = sbr.rel target = $region3
    $region8: #{deep_forward.1} parent=1 // loop_exit
      _

</llo_original>
